<compile_context>
chip_gen: v5e
topology: v5e:2x2
jax: 0.10.0
libtpu: 0.0.40
codegen_flags: <defaults>
</compile_context>

<pallas_src>
import numpy as np

import jax
import jax.numpy as jnp
from jax.experimental import pallas as pl
from jax.experimental.pallas import tpu as pltpu


# ------------------------------ fused kernel --------------------------------

def _encoder_kernel(p1_ref, w1_ref, b1_ref,
                    s2_ref, w2_ref, b2_ref,
                    s3_ref, w3_ref, b3_ref,
                    rw3_ref, rw1_ref,
                    o_ref,
                    pat2_ref, pat3_ref, patr_ref):
    f32 = jnp.float32

    def conv_merged(sel_ref, act, wcat_ref, pat_ref):
        """Conv as 2 matmuls: one im2col gather, one big contraction."""
        m, kcin = pat_ref.shape
        k = sel_ref.shape[0] // m
        cin = kcin // k
        # 1) gather all K taps at once:  (K*M, Min) @ (Min, Cin) -> (K*M, Cin)
        p = jnp.dot(sel_ref[...], act, preferred_element_type=f32)
        # 2) fold (K*M, Cin) -> (M, K*Cin) via K static slice stores to scratch
        #    (rows of Srow are k-major, so tap k is the contiguous row block
        #     [k*M, (k+1)*M); lane offset k*Cin matches Wcat's row ordering).
        for kk in range(k):
            pat_ref[:, kk * cin:(kk + 1) * cin] = p[kk * m:(kk + 1) * m, :]
        # 3) contraction: (M, K*Cin) @ (K*Cin, Cout) -> (M, Cout)
        return jnp.dot(pat_ref[...], wcat_ref[...], preferred_element_type=f32)

    # conv1 (patches precomputed from the raw input) + bias + ReLU  -> (64, 32)
    a1 = jnp.dot(p1_ref[...], w1_ref[...], preferred_element_type=f32)
    a1 = jnp.maximum(a1 + b1_ref[...], 0.0)

    # conv2 (4x4, stride 2, pad 1) + bias + ReLU                    -> (16, 64)
    a2 = conv_merged(s2_ref, a1, w2_ref, pat2_ref)
    a2 = jnp.maximum(a2 + b2_ref[...], 0.0)

    # conv3 (3x3, stride 1, pad 1) + bias (no ReLU)                 -> (16, latent)
    x = conv_merged(s3_ref, a2, w3_ref, pat3_ref) + b3_ref[...]

    # ResidualStack(latent, latent, latent, 2) — shared weights across layers.
    for _ in range(2):
        h = jnp.maximum(x, 0.0)
        h = conv_merged(s3_ref, h, rw3_ref, patr_ref)            # 3x3, bias=False
        h = jnp.maximum(h, 0.0)
        x = x + jnp.dot(h, rw1_ref[...], preferred_element_type=f32)  # 1x1
    o_ref[...] = jnp.maximum(x, 0.0)                              # final ReLU


# ----------------------------- host-side prep -------------------------------

def _im2col(x_nhwc, kh, kw, stride, pad):
    """Per-image patch matrices: (N, OH*OW, KH*KW*C)."""
    n, h, w, c = x_nhwc.shape
    xp = jnp.pad(x_nhwc, ((0, 0), (pad, pad), (pad, pad), (0, 0)))
    oh = (h + 2 * pad - kh) // stride + 1
    ow = (w + 2 * pad - kw) // stride + 1
    cols = [xp[:, i:i + stride * oh:stride, j:j + stride * ow:stride, :]
            for i in range(kh) for j in range(kw)]
    patches = jnp.concatenate(cols, axis=-1)            # (N, OH, OW, KH*KW*C)
    return patches.reshape(n, oh * ow, kh * kw * c), (n, oh, ow)


def _selection_rows(in_h, in_w, out_h, out_w, kh, kw, stride, pad):
    """Stacked per-tap 0/1 gather matrix, per IMAGE: (KH*KW*OH*OW, IH*IW).
    Row (k*OH*OW + oy*OW + ox) selects padded-input pixel
    (oy*stride+ki-pad, ox*stride+kj-pad); all-zero row if that pixel is pad."""
    kk, mm = kh * kw, out_h * out_w
    s = np.zeros((kk * mm, in_h * in_w), np.float32)
    for ki in range(kh):
        for kj in range(kw):
            k = ki * kw + kj
            for oy in range(out_h):
                for ox in range(out_w):
                    y = oy * stride + ki - pad
                    x = ox * stride + kj - pad
                    if 0 <= y < in_h and 0 <= x < in_w:
                        s[k * mm + oy * out_w + ox, y * in_w + x] = 1.0
    return jnp.asarray(s)


def _wcat(w_oihw):
    """(Cout, Cin, KH, KW) -> (KH*KW*Cin, Cout), rows ordered (k, cin)."""
    co, ci, kh, kw = w_oihw.shape
    return jnp.transpose(w_oihw, (2, 3, 1, 0)).reshape(kh * kw * ci, co)


def prepare_params(params, in_hw=16):
    """One-time layout of weights / biases / per-image selection matrices."""
    h1 = (in_hw + 2 - 4) // 2 + 1        # after conv1 (8 for 16x16 input)
    h2 = (h1 + 2 - 4) // 2 + 1           # after conv2 (4)
    latent = params["w3"].shape[0]
    return {
        "p_w1": _wcat(params["w1"]),                                   # (16, 32)
        "p_b1": params["b1"].reshape(1, -1),
        "sel2": _selection_rows(h1, h1, h2, h2, 4, 4, 2, 1),           # (256, 64)
        "p_w2": _wcat(params["w2"]),                                   # (512, 64)
        "p_b2": params["b2"].reshape(1, -1),
        "sel3": _selection_rows(h2, h2, h2, h2, 3, 3, 1, 1),           # (144, 16)
        "p_w3": _wcat(params["w3"]),                                   # (576, latent)
        "p_b3": params["b3"].reshape(1, -1),
        "p_rw3": _wcat(params["rw3"]),                                 # (9*latent, latent)
        "p_rw1": params["rw1"].reshape(latent, latent).T,              # (latent, latent)
    }


# ------------------------------ forward pass ---------------------------------

def encoder_forward(prepped, x_nchw):
    x = jnp.transpose(x_nchw, (0, 2, 3, 1)).astype(jnp.float32)   # NCHW -> NHWC
    p1, (n, oh1, ow1) = _im2col(x, 4, 4, 2, 1)                    # (N, 64, 16)

    # Guard against calling with a resolution different from prepare_params.
    assert oh1 * ow1 == prepped["sel2"].shape[1], \
        "input resolution does not match prepare_params"

    latent = prepped["p_rw1"].shape[1]
    k2, cin2 = 16, 32
    k3, cin3 = 9, 64
    m_out = prepped["sel3"].shape[0] // k3                        # 16 (= 4*4)

    def const(a):  # whole-array block, fetched once (constant index_map)
        return pl.BlockSpec(a.shape, lambda i, _nd=a.ndim: (0,) * _nd)

    out3d = pl.pallas_call(
        _encoder_kernel,
        grid=(n,),
        out_shape=jax.ShapeDtypeStruct((n, m_out, latent), jnp.float32),
        in_specs=[
            pl.BlockSpec((None, oh1 * ow1, 16), lambda i: (i, 0, 0)),  # p1 (per image)
            const(prepped["p_w1"]), const(prepped["p_b1"]),
            const(prepped["sel2"]), const(prepped["p_w2"]), const(prepped["p_b2"]),
            const(prepped["sel3"]), const(prepped["p_w3"]), const(prepped["p_b3"]),
            const(prepped["p_rw3"]), const(prepped["p_rw1"]),
        ],
        out_specs=pl.BlockSpec((None, m_out, latent), lambda i: (i, 0, 0)),
        scratch_shapes=[
            pltpu.VMEM((m_out, k2 * cin2), jnp.float32),     # conv2 folded patches
            pltpu.VMEM((m_out, k3 * cin3), jnp.float32),     # conv3 folded patches
            pltpu.VMEM((m_out, k3 * latent), jnp.float32),   # residual 3x3 patches
        ],
        compiler_params=pltpu.CompilerParams(
            dimension_semantics=("parallel",)),               # both TCs on v7x
    )(p1, prepped["p_w1"], prepped["p_b1"],
      prepped["sel2"], prepped["p_w2"], prepped["p_b2"],
      prepped["sel3"], prepped["p_w3"], prepped["p_b3"],
      prepped["p_rw3"], prepped["p_rw1"])

    oh2, ow2 = oh1 // 2, ow1 // 2
    out = out3d.reshape(n, oh2, ow2, latent)
    return jnp.transpose(out, (0, 3, 1, 2))                       # NHWC -> NCHW


# ------------------------------ parameters -----------------------------------

def init_params(key, latent_dim=64):
    ks = jax.random.split(key, 8)

    def w_init(k, shape):
        fan_in = shape[1] * shape[2] * shape[3]
        return jax.random.normal(k, shape, jnp.float32) / jnp.sqrt(float(fan_in))

    def b_init(k, n):
        return 0.01 * jax.random.normal(k, (n,), jnp.float32)

    return {
        "w1": w_init(ks[0], (32, 1, 4, 4)),   "b1": b_init(ks[1], 32),
        "w2": w_init(ks[2], (64, 32, 4, 4)),  "b2": b_init(ks[3], 64),
        "w3": w_init(ks[4], (latent_dim, 64, 3, 3)), "b3": b_init(ks[5], latent_dim),
        # Residual layer (shared by both entries of the stack), bias=False:
        "rw3": w_init(ks[6], (latent_dim, latent_dim, 3, 3)),
        "rw1": w_init(ks[7], (latent_dim, latent_dim, 1, 1)),
    }


# --------------------------- pure-JAX reference ------------------------------

def _ref_conv(x, w_oihw, b, stride, padding):
    out = jax.lax.conv_general_dilated(
        x, jnp.transpose(w_oihw, (2, 3, 1, 0)),
        window_strides=(stride, stride),
        padding=[(padding, padding), (padding, padding)],
        dimension_numbers=("NHWC", "HWIO", "NHWC"),
        precision=jax.lax.Precision.HIGHEST)
    return out if b is None else out + b


def encoder_ref(params, x_nchw):
    x = jnp.transpose(x_nchw, (0, 2, 3, 1)).astype(jnp.float32)
    x = jax.nn.relu(_ref_conv(x, params["w1"], params["b1"], 2, 1))
    x = jax.nn.relu(_ref_conv(x, params["w2"], params["b2"], 2, 1))
    x = _ref_conv(x, params["w3"], params["b3"], 1, 1)
    for _ in range(2):
        h = jax.nn.relu(x)
        h = jax.nn.relu(_ref_conv(h, params["rw3"], None, 1, 1))
        h = _ref_conv(h, params["rw1"], None, 1, 0)
        x = x + h
    x = jax.nn.relu(x)
    return jnp.transpose(x, (0, 3, 1, 2))


# ----------------------------------- main ------------------------------------

if __name__ == "__main__":
    key = jax.random.PRNGKey(0)
    k_param, k_x = jax.random.split(key)
    latent_dim = 64
    params = init_params(k_param, latent_dim)

    x = jax.random.normal(k_x, (2, 1, 16, 16), jnp.float32)       # NCHW, like torch
    prepped = prepare_params(params, in_hw=x.shape[2])

    out = jax.block_until_ready(jax.jit(encoder_forward)(prepped, x))
    assert out.shape == (2, latent_dim, 4, 4), out.shape

    ref = jax.block_until_ready(encoder_ref(params, x))
    max_err = float(jnp.max(jnp.abs(out - ref)))
    assert jnp.allclose(out, ref, atol=2e-3, rtol=2e-3), max_err

    print("KERNEL_OK")
</pallas_src>

<mosaic_0001>
module attributes {stable_mosaic.version = 11 : i64} {
  func.func @_encoder_kernel(%arg0: i32, %arg1: memref<1x64x16xf32, #tpu.memory_space<vmem>>, %arg2: memref<16x32xf32, #tpu.memory_space<vmem>>, %arg3: memref<1x32xf32, #tpu.memory_space<vmem>>, %arg4: memref<256x64xf32, #tpu.memory_space<vmem>>, %arg5: memref<512x64xf32, #tpu.memory_space<vmem>>, %arg6: memref<1x64xf32, #tpu.memory_space<vmem>>, %arg7: memref<144x16xf32, #tpu.memory_space<vmem>>, %arg8: memref<576x64xf32, #tpu.memory_space<vmem>>, %arg9: memref<1x64xf32, #tpu.memory_space<vmem>>, %arg10: memref<576x64xf32, #tpu.memory_space<vmem>>, %arg11: memref<64x64xf32, #tpu.memory_space<vmem>>, %arg12: memref<1x16x64xf32, #tpu.memory_space<vmem>>, %arg13: memref<16x512xf32, #tpu.memory_space<vmem>>, %arg14: memref<16x576xf32, #tpu.memory_space<vmem>>, %arg15: memref<16x576xf32, #tpu.memory_space<vmem>>) attributes {dimension_semantics = [#tpu.dimension_semantics<parallel>], iteration_bounds = array<i64: 2>, scalar_prefetch = 0 : i64, scratch_operands = 3 : i64, tpu.core_type = #tpu.core_type<tc>, window_params = [{transform_indices = @transform_0, window_bounds = array<i64: 1, 64, 16>}, {pipeline_mode = #tpu.pipeline_mode<synchronous>, transform_indices = @transform_1, window_bounds = array<i64: 16, 32>}, {pipeline_mode = #tpu.pipeline_mode<synchronous>, transform_indices = @transform_2, window_bounds = array<i64: 1, 32>}, {pipeline_mode = #tpu.pipeline_mode<synchronous>, transform_indices = @transform_3, window_bounds = array<i64: 256, 64>}, {pipeline_mode = #tpu.pipeline_mode<synchronous>, transform_indices = @transform_4, window_bounds = array<i64: 512, 64>}, {pipeline_mode = #tpu.pipeline_mode<synchronous>, transform_indices = @transform_5, window_bounds = array<i64: 1, 64>}, {pipeline_mode = #tpu.pipeline_mode<synchronous>, transform_indices = @transform_6, window_bounds = array<i64: 144, 16>}, {pipeline_mode = #tpu.pipeline_mode<synchronous>, transform_indices = @transform_7, window_bounds = array<i64: 576, 64>}, {pipeline_mode = #tpu.pipeline_mode<synchronous>, transform_indices = @transform_8, window_bounds = array<i64: 1, 64>}, {pipeline_mode = #tpu.pipeline_mode<synchronous>, transform_indices = @transform_9, window_bounds = array<i64: 576, 64>}, {pipeline_mode = #tpu.pipeline_mode<synchronous>, transform_indices = @transform_10, window_bounds = array<i64: 64, 64>}, {transform_indices = @transform_11, window_bounds = array<i64: 1, 16, 64>}]} {
    %c0 = arith.constant 0 : index
    %c0_0 = arith.constant 0 : index
    %c0_1 = arith.constant 0 : index
    %0 = vector.load %arg1[%c0, %c0_0, %c0_1] : memref<1x64x16xf32, #tpu.memory_space<vmem>>, vector<1x64x16xf32>
    %1 = vector.shape_cast %0 : vector<1x64x16xf32> to vector<64x16xf32>
    %c0_2 = arith.constant 0 : index
    %c0_3 = arith.constant 0 : index
    %2 = vector.load %arg2[%c0_2, %c0_3] : memref<16x32xf32, #tpu.memory_space<vmem>>, vector<16x32xf32>
    %cst = arith.constant dense<0.000000e+00> : vector<64x32xf32>
    %3 = tpu.matmul %1, %2, %cst {dimension_numbers = #tpu.dot_dimension_numbers<[1], [0], [0], [1], [0, 0, 1, 1], [], []>} : vector<64x16xf32>, vector<16x32xf32>, vector<64x32xf32> -> vector<64x32xf32>
    %c0_4 = arith.constant 0 : index
    %c0_5 = arith.constant 0 : index
    %4 = vector.load %arg3[%c0_4, %c0_5] : memref<1x32xf32, #tpu.memory_space<vmem>>, vector<1x32xf32>
    %5 = vector.broadcast %4 : vector<1x32xf32> to vector<64x32xf32>
    %6 = arith.addf %3, %5 : vector<64x32xf32>
    %cst_6 = arith.constant 0.000000e+00 : f32
    %7 = vector.broadcast %cst_6 : f32 to vector<64x32xf32>
    %8 = arith.maximumf %6, %7 : vector<64x32xf32>
    %c0_7 = arith.constant 0 : index
    %c0_8 = arith.constant 0 : index
    %9 = vector.load %arg4[%c0_7, %c0_8] : memref<256x64xf32, #tpu.memory_space<vmem>>, vector<256x64xf32>
    %cst_9 = arith.constant dense<0.000000e+00> : vector<256x32xf32>
    %10 = tpu.matmul %9, %8, %cst_9 {dimension_numbers = #tpu.dot_dimension_numbers<[1], [0], [0], [1], [0, 0, 1, 1], [], []>} : vector<256x64xf32>, vector<64x32xf32>, vector<256x32xf32> -> vector<256x32xf32>
    %11 = vector.extract_strided_slice %10 {offsets = [0, 0], sizes = [16, 32], strides = [1, 1]} : vector<256x32xf32> to vector<16x32xf32>
    %c0_10 = arith.constant 0 : index
    %c0_11 = arith.constant 0 : index
    %12 = vector.load %arg13[%c0_10, %c0_11] : memref<16x512xf32, #tpu.memory_space<vmem>>, vector<16x32xf32>
    tpu.vector_store %arg13[%c0_10, %c0_11], %11 {strides = array<i32>} : memref<16x512xf32, #tpu.memory_space<vmem>>, vector<16x32xf32>,
    %13 = vector.extract_strided_slice %10 {offsets = [16, 0], sizes = [16, 32], strides = [1, 1]} : vector<256x32xf32> to vector<16x32xf32>
    %c0_12 = arith.constant 0 : index
    %c32 = arith.constant 32 : index
    %14 = vector.load %arg13[%c0_12, %c32] : memref<16x512xf32, #tpu.memory_space<vmem>>, vector<16x32xf32>
    tpu.vector_store %arg13[%c0_12, %c32], %13 {strides = array<i32>} : memref<16x512xf32, #tpu.memory_space<vmem>>, vector<16x32xf32>,
    %15 = vector.extract_strided_slice %10 {offsets = [32, 0], sizes = [16, 32], strides = [1, 1]} : vector<256x32xf32> to vector<16x32xf32>
    %c0_13 = arith.constant 0 : index
    %c64 = arith.constant 64 : index
    %16 = vector.load %arg13[%c0_13, %c64] : memref<16x512xf32, #tpu.memory_space<vmem>>, vector<16x32xf32>
    tpu.vector_store %arg13[%c0_13, %c64], %15 {strides = array<i32>} : memref<16x512xf32, #tpu.memory_space<vmem>>, vector<16x32xf32>,
    %17 = vector.extract_strided_slice %10 {offsets = [48, 0], sizes = [16, 32], strides = [1, 1]} : vector<256x32xf32> to vector<16x32xf32>
    %c0_14 = arith.constant 0 : index
    %c96 = arith.constant 96 : index
    %18 = vector.load %arg13[%c0_14, %c96] : memref<16x512xf32, #tpu.memory_space<vmem>>, vector<16x32xf32>
    tpu.vector_store %arg13[%c0_14, %c96], %17 {strides = array<i32>} : memref<16x512xf32, #tpu.memory_space<vmem>>, vector<16x32xf32>,
    %19 = vector.extract_strided_slice %10 {offsets = [64, 0], sizes = [16, 32], strides = [1, 1]} : vector<256x32xf32> to vector<16x32xf32>
    %c0_15 = arith.constant 0 : index
    %c128 = arith.constant 128 : index
    %20 = vector.load %arg13[%c0_15, %c128] : memref<16x512xf32, #tpu.memory_space<vmem>>, vector<16x32xf32>
    tpu.vector_store %arg13[%c0_15, %c128], %19 {strides = array<i32>} : memref<16x512xf32, #tpu.memory_space<vmem>>, vector<16x32xf32>,
    %21 = vector.extract_strided_slice %10 {offsets = [80, 0], sizes = [16, 32], strides = [1, 1]} : vector<256x32xf32> to vector<16x32xf32>
    %c0_16 = arith.constant 0 : index
    %c160 = arith.constant 160 : index
    %22 = vector.load %arg13[%c0_16, %c160] : memref<16x512xf32, #tpu.memory_space<vmem>>, vector<16x32xf32>
    tpu.vector_store %arg13[%c0_16, %c160], %21 {strides = array<i32>} : memref<16x512xf32, #tpu.memory_space<vmem>>, vector<16x32xf32>,
    %23 = vector.extract_strided_slice %10 {offsets = [96, 0], sizes = [16, 32], strides = [1, 1]} : vector<256x32xf32> to vector<16x32xf32>
    %c0_17 = arith.constant 0 : index
    %c192 = arith.constant 192 : index
    %24 = vector.load %arg13[%c0_17, %c192] : memref<16x512xf32, #tpu.memory_space<vmem>>, vector<16x32xf32>
    tpu.vector_store %arg13[%c0_17, %c192], %23 {strides = array<i32>} : memref<16x512xf32, #tpu.memory_space<vmem>>, vector<16x32xf32>,
    %25 = vector.extract_strided_slice %10 {offsets = [112, 0], sizes = [16, 32], strides = [1, 1]} : vector<256x32xf32> to vector<16x32xf32>
    %c0_18 = arith.constant 0 : index
    %c224 = arith.constant 224 : index
    %26 = vector.load %arg13[%c0_18, %c224] : memref<16x512xf32, #tpu.memory_space<vmem>>, vector<16x32xf32>
    tpu.vector_store %arg13[%c0_18, %c224], %25 {strides = array<i32>} : memref<16x512xf32, #tpu.memory_space<vmem>>, vector<16x32xf32>,
    %27 = vector.extract_strided_slice %10 {offsets = [128, 0], sizes = [16, 32], strides = [1, 1]} : vector<256x32xf32> to vector<16x32xf32>
    %c0_19 = arith.constant 0 : index
    %c256 = arith.constant 256 : index
    %28 = vector.load %arg13[%c0_19, %c256] : memref<16x512xf32, #tpu.memory_space<vmem>>, vector<16x32xf32>
    tpu.vector_store %arg13[%c0_19, %c256], %27 {strides = array<i32>} : memref<16x512xf32, #tpu.memory_space<vmem>>, vector<16x32xf32>,
    %29 = vector.extract_strided_slice %10 {offsets = [144, 0], sizes = [16, 32], strides = [1, 1]} : vector<256x32xf32> to vector<16x32xf32>
    %c0_20 = arith.constant 0 : index
    %c288 = arith.constant 288 : index
    %30 = vector.load %arg13[%c0_20, %c288] : memref<16x512xf32, #tpu.memory_space<vmem>>, vector<16x32xf32>
    tpu.vector_store %arg13[%c0_20, %c288], %29 {strides = array<i32>} : memref<16x512xf32, #tpu.memory_space<vmem>>, vector<16x32xf32>,
    %31 = vector.extract_strided_slice %10 {offsets = [160, 0], sizes = [16, 32], strides = [1, 1]} : vector<256x32xf32> to vector<16x32xf32>
    %c0_21 = arith.constant 0 : index
    %c320 = arith.constant 320 : index
    %32 = vector.load %arg13[%c0_21, %c320] : memref<16x512xf32, #tpu.memory_space<vmem>>, vector<16x32xf32>
    tpu.vector_store %arg13[%c0_21, %c320], %31 {strides = array<i32>} : memref<16x512xf32, #tpu.memory_space<vmem>>, vector<16x32xf32>,
    %33 = vector.extract_strided_slice %10 {offsets = [176, 0], sizes = [16, 32], strides = [1, 1]} : vector<256x32xf32> to vector<16x32xf32>
    %c0_22 = arith.constant 0 : index
    %c352 = arith.constant 352 : index
    %34 = vector.load %arg13[%c0_22, %c352] : memref<16x512xf32, #tpu.memory_space<vmem>>, vector<16x32xf32>
    tpu.vector_store %arg13[%c0_22, %c352], %33 {strides = array<i32>} : memref<16x512xf32, #tpu.memory_space<vmem>>, vector<16x32xf32>,
    %35 = vector.extract_strided_slice %10 {offsets = [192, 0], sizes = [16, 32], strides = [1, 1]} : vector<256x32xf32> to vector<16x32xf32>
    %c0_23 = arith.constant 0 : index
    %c384 = arith.constant 384 : index
    %36 = vector.load %arg13[%c0_23, %c384] : memref<16x512xf32, #tpu.memory_space<vmem>>, vector<16x32xf32>
    tpu.vector_store %arg13[%c0_23, %c384], %35 {strides = array<i32>} : memref<16x512xf32, #tpu.memory_space<vmem>>, vector<16x32xf32>,
    %37 = vector.extract_strided_slice %10 {offsets = [208, 0], sizes = [16, 32], strides = [1, 1]} : vector<256x32xf32> to vector<16x32xf32>
    %c0_24 = arith.constant 0 : index
    %c416 = arith.constant 416 : index
    %38 = vector.load %arg13[%c0_24, %c416] : memref<16x512xf32, #tpu.memory_space<vmem>>, vector<16x32xf32>
    tpu.vector_store %arg13[%c0_24, %c416], %37 {strides = array<i32>} : memref<16x512xf32, #tpu.memory_space<vmem>>, vector<16x32xf32>,
    %39 = vector.extract_strided_slice %10 {offsets = [224, 0], sizes = [16, 32], strides = [1, 1]} : vector<256x32xf32> to vector<16x32xf32>
    %c0_25 = arith.constant 0 : index
    %c448 = arith.constant 448 : index
    %40 = vector.load %arg13[%c0_25, %c448] : memref<16x512xf32, #tpu.memory_space<vmem>>, vector<16x32xf32>
    tpu.vector_store %arg13[%c0_25, %c448], %39 {strides = array<i32>} : memref<16x512xf32, #tpu.memory_space<vmem>>, vector<16x32xf32>,
    %41 = vector.extract_strided_slice %10 {offsets = [240, 0], sizes = [16, 32], strides = [1, 1]} : vector<256x32xf32> to vector<16x32xf32>
    %c0_26 = arith.constant 0 : index
    %c480 = arith.constant 480 : index
    %42 = vector.load %arg13[%c0_26, %c480] : memref<16x512xf32, #tpu.memory_space<vmem>>, vector<16x32xf32>
    tpu.vector_store %arg13[%c0_26, %c480], %41 {strides = array<i32>} : memref<16x512xf32, #tpu.memory_space<vmem>>, vector<16x32xf32>,
    %c0_27 = arith.constant 0 : index
    %c0_28 = arith.constant 0 : index
    %43 = vector.load %arg13[%c0_27, %c0_28] : memref<16x512xf32, #tpu.memory_space<vmem>>, vector<16x512xf32>
    %c0_29 = arith.constant 0 : index
    %c0_30 = arith.constant 0 : index
    %44 = vector.load %arg5[%c0_29, %c0_30] : memref<512x64xf32, #tpu.memory_space<vmem>>, vector<512x64xf32>
    %cst_31 = arith.constant dense<0.000000e+00> : vector<16x64xf32>
    %45 = tpu.matmul %43, %44, %cst_31 {dimension_numbers = #tpu.dot_dimension_numbers<[1], [0], [0], [1], [0, 0, 1, 1], [], []>} : vector<16x512xf32>, vector<512x64xf32>, vector<16x64xf32> -> vector<16x64xf32>
    %c0_32 = arith.constant 0 : index
    %c0_33 = arith.constant 0 : index
    %46 = vector.load %arg6[%c0_32, %c0_33] : memref<1x64xf32, #tpu.memory_space<vmem>>, vector<1x64xf32>
    %47 = vector.broadcast %46 : vector<1x64xf32> to vector<16x64xf32>
    %48 = arith.addf %45, %47 : vector<16x64xf32>
    %cst_34 = arith.constant 0.000000e+00 : f32
    %49 = vector.broadcast %cst_34 : f32 to vector<16x64xf32>
    %50 = arith.maximumf %48, %49 : vector<16x64xf32>
    %c0_35 = arith.constant 0 : index
    %c0_36 = arith.constant 0 : index
    %51 = vector.load %arg7[%c0_35, %c0_36] : memref<144x16xf32, #tpu.memory_space<vmem>>, vector<144x16xf32>
    %cst_37 = arith.constant dense<0.000000e+00> : vector<144x64xf32>
    %52 = tpu.matmul %51, %50, %cst_37 {dimension_numbers = #tpu.dot_dimension_numbers<[1], [0], [0], [1], [0, 0, 1, 1], [], []>} : vector<144x16xf32>, vector<16x64xf32>, vector<144x64xf32> -> vector<144x64xf32>
    %53 = vector.extract_strided_slice %52 {offsets = [0, 0], sizes = [16, 64], strides = [1, 1]} : vector<144x64xf32> to vector<16x64xf32>
    %c0_38 = arith.constant 0 : index
    %c0_39 = arith.constant 0 : index
    %54 = vector.load %arg14[%c0_38, %c0_39] : memref<16x576xf32, #tpu.memory_space<vmem>>, vector<16x64xf32>
    tpu.vector_store %arg14[%c0_38, %c0_39], %53 {strides = array<i32>} : memref<16x576xf32, #tpu.memory_space<vmem>>, vector<16x64xf32>,
    %55 = vector.extract_strided_slice %52 {offsets = [16, 0], sizes = [16, 64], strides = [1, 1]} : vector<144x64xf32> to vector<16x64xf32>
    %c0_40 = arith.constant 0 : index
    %c64_41 = arith.constant 64 : index
    %56 = vector.load %arg14[%c0_40, %c64_41] : memref<16x576xf32, #tpu.memory_space<vmem>>, vector<16x64xf32>
    tpu.vector_store %arg14[%c0_40, %c64_41], %55 {strides = array<i32>} : memref<16x576xf32, #tpu.memory_space<vmem>>, vector<16x64xf32>,
    %57 = vector.extract_strided_slice %52 {offsets = [32, 0], sizes = [16, 64], strides = [1, 1]} : vector<144x64xf32> to vector<16x64xf32>
    %c0_42 = arith.constant 0 : index
    %c128_43 = arith.constant 128 : index
    %58 = vector.load %arg14[%c0_42, %c128_43] : memref<16x576xf32, #tpu.memory_space<vmem>>, vector<16x64xf32>
    tpu.vector_store %arg14[%c0_42, %c128_43], %57 {strides = array<i32>} : memref<16x576xf32, #tpu.memory_space<vmem>>, vector<16x64xf32>,
    %59 = vector.extract_strided_slice %52 {offsets = [48, 0], sizes = [16, 64], strides = [1, 1]} : vector<144x64xf32> to vector<16x64xf32>
    %c0_44 = arith.constant 0 : index
    %c192_45 = arith.constant 192 : index
    %60 = vector.load %arg14[%c0_44, %c192_45] : memref<16x576xf32, #tpu.memory_space<vmem>>, vector<16x64xf32>
    tpu.vector_store %arg14[%c0_44, %c192_45], %59 {strides = array<i32>} : memref<16x576xf32, #tpu.memory_space<vmem>>, vector<16x64xf32>,
    %61 = vector.extract_strided_slice %52 {offsets = [64, 0], sizes = [16, 64], strides = [1, 1]} : vector<144x64xf32> to vector<16x64xf32>
    %c0_46 = arith.constant 0 : index
    %c256_47 = arith.constant 256 : index
    %62 = vector.load %arg14[%c0_46, %c256_47] : memref<16x576xf32, #tpu.memory_space<vmem>>, vector<16x64xf32>
    tpu.vector_store %arg14[%c0_46, %c256_47], %61 {strides = array<i32>} : memref<16x576xf32, #tpu.memory_space<vmem>>, vector<16x64xf32>,
    %63 = vector.extract_strided_slice %52 {offsets = [80, 0], sizes = [16, 64], strides = [1, 1]} : vector<144x64xf32> to vector<16x64xf32>
    %c0_48 = arith.constant 0 : index
    %c320_49 = arith.constant 320 : index
    %64 = vector.load %arg14[%c0_48, %c320_49] : memref<16x576xf32, #tpu.memory_space<vmem>>, vector<16x64xf32>
    tpu.vector_store %arg14[%c0_48, %c320_49], %63 {strides = array<i32>} : memref<16x576xf32, #tpu.memory_space<vmem>>, vector<16x64xf32>,
    %65 = vector.extract_strided_slice %52 {offsets = [96, 0], sizes = [16, 64], strides = [1, 1]} : vector<144x64xf32> to vector<16x64xf32>
    %c0_50 = arith.constant 0 : index
    %c384_51 = arith.constant 384 : index
    %66 = vector.load %arg14[%c0_50, %c384_51] : memref<16x576xf32, #tpu.memory_space<vmem>>, vector<16x64xf32>
    tpu.vector_store %arg14[%c0_50, %c384_51], %65 {strides = array<i32>} : memref<16x576xf32, #tpu.memory_space<vmem>>, vector<16x64xf32>,
    %67 = vector.extract_strided_slice %52 {offsets = [112, 0], sizes = [16, 64], strides = [1, 1]} : vector<144x64xf32> to vector<16x64xf32>
    %c0_52 = arith.constant 0 : index
    %c448_53 = arith.constant 448 : index
    %68 = vector.load %arg14[%c0_52, %c448_53] : memref<16x576xf32, #tpu.memory_space<vmem>>, vector<16x64xf32>
    tpu.vector_store %arg14[%c0_52, %c448_53], %67 {strides = array<i32>} : memref<16x576xf32, #tpu.memory_space<vmem>>, vector<16x64xf32>,
    %69 = vector.extract_strided_slice %52 {offsets = [128, 0], sizes = [16, 64], strides = [1, 1]} : vector<144x64xf32> to vector<16x64xf32>
    %c0_54 = arith.constant 0 : index
    %c512 = arith.constant 512 : index
    %70 = vector.load %arg14[%c0_54, %c512] : memref<16x576xf32, #tpu.memory_space<vmem>>, vector<16x64xf32>
    tpu.vector_store %arg14[%c0_54, %c512], %69 {strides = array<i32>} : memref<16x576xf32, #tpu.memory_space<vmem>>, vector<16x64xf32>,
    %c0_55 = arith.constant 0 : index
    %c0_56 = arith.constant 0 : index
    %71 = vector.load %arg14[%c0_55, %c0_56] : memref<16x576xf32, #tpu.memory_space<vmem>>, vector<16x576xf32>
    %c0_57 = arith.constant 0 : index
    %c0_58 = arith.constant 0 : index
    %72 = vector.load %arg8[%c0_57, %c0_58] : memref<576x64xf32, #tpu.memory_space<vmem>>, vector<576x64xf32>
    %cst_59 = arith.constant dense<0.000000e+00> : vector<16x64xf32>
    %73 = tpu.matmul %71, %72, %cst_59 {dimension_numbers = #tpu.dot_dimension_numbers<[1], [0], [0], [1], [0, 0, 1, 1], [], []>} : vector<16x576xf32>, vector<576x64xf32>, vector<16x64xf32> -> vector<16x64xf32>
    %c0_60 = arith.constant 0 : index
    %c0_61 = arith.constant 0 : index
    %74 = vector.load %arg9[%c0_60, %c0_61] : memref<1x64xf32, #tpu.memory_space<vmem>>, vector<1x64xf32>
    %75 = vector.broadcast %74 : vector<1x64xf32> to vector<16x64xf32>
    %76 = arith.addf %73, %75 : vector<16x64xf32>
    %cst_62 = arith.constant 0.000000e+00 : f32
    %77 = vector.broadcast %cst_62 : f32 to vector<16x64xf32>
    %78 = arith.maximumf %76, %77 : vector<16x64xf32>
    %c0_63 = arith.constant 0 : index
    %c0_64 = arith.constant 0 : index
    %79 = vector.load %arg7[%c0_63, %c0_64] : memref<144x16xf32, #tpu.memory_space<vmem>>, vector<144x16xf32>
    %cst_65 = arith.constant dense<0.000000e+00> : vector<144x64xf32>
    %80 = tpu.matmul %79, %78, %cst_65 {dimension_numbers = #tpu.dot_dimension_numbers<[1], [0], [0], [1], [0, 0, 1, 1], [], []>} : vector<144x16xf32>, vector<16x64xf32>, vector<144x64xf32> -> vector<144x64xf32>
    %81 = vector.extract_strided_slice %80 {offsets = [0, 0], sizes = [16, 64], strides = [1, 1]} : vector<144x64xf32> to vector<16x64xf32>
    %c0_66 = arith.constant 0 : index
    %c0_67 = arith.constant 0 : index
    %82 = vector.load %arg15[%c0_66, %c0_67] : memref<16x576xf32, #tpu.memory_space<vmem>>, vector<16x64xf32>
    tpu.vector_store %arg15[%c0_66, %c0_67], %81 {strides = array<i32>} : memref<16x576xf32, #tpu.memory_space<vmem>>, vector<16x64xf32>,
    %83 = vector.extract_strided_slice %80 {offsets = [16, 0], sizes = [16, 64], strides = [1, 1]} : vector<144x64xf32> to vector<16x64xf32>
    %c0_68 = arith.constant 0 : index
    %c64_69 = arith.constant 64 : index
    %84 = vector.load %arg15[%c0_68, %c64_69] : memref<16x576xf32, #tpu.memory_space<vmem>>, vector<16x64xf32>
    tpu.vector_store %arg15[%c0_68, %c64_69], %83 {strides = array<i32>} : memref<16x576xf32, #tpu.memory_space<vmem>>, vector<16x64xf32>,
    %85 = vector.extract_strided_slice %80 {offsets = [32, 0], sizes = [16, 64], strides = [1, 1]} : vector<144x64xf32> to vector<16x64xf32>
    %c0_70 = arith.constant 0 : index
    %c128_71 = arith.constant 128 : index
    %86 = vector.load %arg15[%c0_70, %c128_71] : memref<16x576xf32, #tpu.memory_space<vmem>>, vector<16x64xf32>
    tpu.vector_store %arg15[%c0_70, %c128_71], %85 {strides = array<i32>} : memref<16x576xf32, #tpu.memory_space<vmem>>, vector<16x64xf32>,
    %87 = vector.extract_strided_slice %80 {offsets = [48, 0], sizes = [16, 64], strides = [1, 1]} : vector<144x64xf32> to vector<16x64xf32>
    %c0_72 = arith.constant 0 : index
    %c192_73 = arith.constant 192 : index
    %88 = vector.load %arg15[%c0_72, %c192_73] : memref<16x576xf32, #tpu.memory_space<vmem>>, vector<16x64xf32>
    tpu.vector_store %arg15[%c0_72, %c192_73], %87 {strides = array<i32>} : memref<16x576xf32, #tpu.memory_space<vmem>>, vector<16x64xf32>,
    %89 = vector.extract_strided_slice %80 {offsets = [64, 0], sizes = [16, 64], strides = [1, 1]} : vector<144x64xf32> to vector<16x64xf32>
    %c0_74 = arith.constant 0 : index
    %c256_75 = arith.constant 256 : index
    %90 = vector.load %arg15[%c0_74, %c256_75] : memref<16x576xf32, #tpu.memory_space<vmem>>, vector<16x64xf32>
    tpu.vector_store %arg15[%c0_74, %c256_75], %89 {strides = array<i32>} : memref<16x576xf32, #tpu.memory_space<vmem>>, vector<16x64xf32>,
    %91 = vector.extract_strided_slice %80 {offsets = [80, 0], sizes = [16, 64], strides = [1, 1]} : vector<144x64xf32> to vector<16x64xf32>
    %c0_76 = arith.constant 0 : index
    %c320_77 = arith.constant 320 : index
    %92 = vector.load %arg15[%c0_76, %c320_77] : memref<16x576xf32, #tpu.memory_space<vmem>>, vector<16x64xf32>
    tpu.vector_store %arg15[%c0_76, %c320_77], %91 {strides = array<i32>} : memref<16x576xf32, #tpu.memory_space<vmem>>, vector<16x64xf32>,
    %93 = vector.extract_strided_slice %80 {offsets = [96, 0], sizes = [16, 64], strides = [1, 1]} : vector<144x64xf32> to vector<16x64xf32>
    %c0_78 = arith.constant 0 : index
    %c384_79 = arith.constant 384 : index
    %94 = vector.load %arg15[%c0_78, %c384_79] : memref<16x576xf32, #tpu.memory_space<vmem>>, vector<16x64xf32>
    tpu.vector_store %arg15[%c0_78, %c384_79], %93 {strides = array<i32>} : memref<16x576xf32, #tpu.memory_space<vmem>>, vector<16x64xf32>,
    %95 = vector.extract_strided_slice %80 {offsets = [112, 0], sizes = [16, 64], strides = [1, 1]} : vector<144x64xf32> to vector<16x64xf32>
    %c0_80 = arith.constant 0 : index
    %c448_81 = arith.constant 448 : index
    %96 = vector.load %arg15[%c0_80, %c448_81] : memref<16x576xf32, #tpu.memory_space<vmem>>, vector<16x64xf32>
    tpu.vector_store %arg15[%c0_80, %c448_81], %95 {strides = array<i32>} : memref<16x576xf32, #tpu.memory_space<vmem>>, vector<16x64xf32>,
    %97 = vector.extract_strided_slice %80 {offsets = [128, 0], sizes = [16, 64], strides = [1, 1]} : vector<144x64xf32> to vector<16x64xf32>
    %c0_82 = arith.constant 0 : index
    %c512_83 = arith.constant 512 : index
    %98 = vector.load %arg15[%c0_82, %c512_83] : memref<16x576xf32, #tpu.memory_space<vmem>>, vector<16x64xf32>
    tpu.vector_store %arg15[%c0_82, %c512_83], %97 {strides = array<i32>} : memref<16x576xf32, #tpu.memory_space<vmem>>, vector<16x64xf32>,
    %c0_84 = arith.constant 0 : index
    %c0_85 = arith.constant 0 : index
    %99 = vector.load %arg15[%c0_84, %c0_85] : memref<16x576xf32, #tpu.memory_space<vmem>>, vector<16x576xf32>
    %c0_86 = arith.constant 0 : index
    %c0_87 = arith.constant 0 : index
    %100 = vector.load %arg10[%c0_86, %c0_87] : memref<576x64xf32, #tpu.memory_space<vmem>>, vector<576x64xf32>
    %cst_88 = arith.constant dense<0.000000e+00> : vector<16x64xf32>
    %101 = tpu.matmul %99, %100, %cst_88 {dimension_numbers = #tpu.dot_dimension_numbers<[1], [0], [0], [1], [0, 0, 1, 1], [], []>} : vector<16x576xf32>, vector<576x64xf32>, vector<16x64xf32> -> vector<16x64xf32>
    %cst_89 = arith.constant 0.000000e+00 : f32
    %102 = vector.broadcast %cst_89 : f32 to vector<16x64xf32>
    %103 = arith.maximumf %101, %102 : vector<16x64xf32>
    %c0_90 = arith.constant 0 : index
    %c0_91 = arith.constant 0 : index
    %104 = vector.load %arg11[%c0_90, %c0_91] : memref<64x64xf32, #tpu.memory_space<vmem>>, vector<64x64xf32>
    %cst_92 = arith.constant dense<0.000000e+00> : vector<16x64xf32>
    %105 = tpu.matmul %103, %104, %cst_92 {dimension_numbers = #tpu.dot_dimension_numbers<[1], [0], [0], [1], [0, 0, 1, 1], [], []>} : vector<16x64xf32>, vector<64x64xf32>, vector<16x64xf32> -> vector<16x64xf32>
    %106 = arith.addf %76, %105 : vector<16x64xf32>
    %cst_93 = arith.constant 0.000000e+00 : f32
    %107 = vector.broadcast %cst_93 : f32 to vector<16x64xf32>
    %108 = arith.maximumf %106, %107 : vector<16x64xf32>
    %c0_94 = arith.constant 0 : index
    %c0_95 = arith.constant 0 : index
    %109 = vector.load %arg7[%c0_94, %c0_95] : memref<144x16xf32, #tpu.memory_space<vmem>>, vector<144x16xf32>
    %cst_96 = arith.constant dense<0.000000e+00> : vector<144x64xf32>
    %110 = tpu.matmul %109, %108, %cst_96 {dimension_numbers = #tpu.dot_dimension_numbers<[1], [0], [0], [1], [0, 0, 1, 1], [], []>} : vector<144x16xf32>, vector<16x64xf32>, vector<144x64xf32> -> vector<144x64xf32>
    %111 = vector.extract_strided_slice %110 {offsets = [0, 0], sizes = [16, 64], strides = [1, 1]} : vector<144x64xf32> to vector<16x64xf32>
    %c0_97 = arith.constant 0 : index
    %c0_98 = arith.constant 0 : index
    %112 = vector.load %arg15[%c0_97, %c0_98] : memref<16x576xf32, #tpu.memory_space<vmem>>, vector<16x64xf32>
    tpu.vector_store %arg15[%c0_97, %c0_98], %111 {strides = array<i32>} : memref<16x576xf32, #tpu.memory_space<vmem>>, vector<16x64xf32>,
    %113 = vector.extract_strided_slice %110 {offsets = [16, 0], sizes = [16, 64], strides = [1, 1]} : vector<144x64xf32> to vector<16x64xf32>
    %c0_99 = arith.constant 0 : index
    %c64_100 = arith.constant 64 : index
    %114 = vector.load %arg15[%c0_99, %c64_100] : memref<16x576xf32, #tpu.memory_space<vmem>>, vector<16x64xf32>
    tpu.vector_store %arg15[%c0_99, %c64_100], %113 {strides = array<i32>} : memref<16x576xf32, #tpu.memory_space<vmem>>, vector<16x64xf32>,
    %115 = vector.extract_strided_slice %110 {offsets = [32, 0], sizes = [16, 64], strides = [1, 1]} : vector<144x64xf32> to vector<16x64xf32>
    %c0_101 = arith.constant 0 : index
    %c128_102 = arith.constant 128 : index
    %116 = vector.load %arg15[%c0_101, %c128_102] : memref<16x576xf32, #tpu.memory_space<vmem>>, vector<16x64xf32>
    tpu.vector_store %arg15[%c0_101, %c128_102], %115 {strides = array<i32>} : memref<16x576xf32, #tpu.memory_space<vmem>>, vector<16x64xf32>,
    %117 = vector.extract_strided_slice %110 {offsets = [48, 0], sizes = [16, 64], strides = [1, 1]} : vector<144x64xf32> to vector<16x64xf32>
    %c0_103 = arith.constant 0 : index
    %c192_104 = arith.constant 192 : index
    %118 = vector.load %arg15[%c0_103, %c192_104] : memref<16x576xf32, #tpu.memory_space<vmem>>, vector<16x64xf32>
    tpu.vector_store %arg15[%c0_103, %c192_104], %117 {strides = array<i32>} : memref<16x576xf32, #tpu.memory_space<vmem>>, vector<16x64xf32>,
    %119 = vector.extract_strided_slice %110 {offsets = [64, 0], sizes = [16, 64], strides = [1, 1]} : vector<144x64xf32> to vector<16x64xf32>
    %c0_105 = arith.constant 0 : index
    %c256_106 = arith.constant 256 : index
    %120 = vector.load %arg15[%c0_105, %c256_106] : memref<16x576xf32, #tpu.memory_space<vmem>>, vector<16x64xf32>
    tpu.vector_store %arg15[%c0_105, %c256_106], %119 {strides = array<i32>} : memref<16x576xf32, #tpu.memory_space<vmem>>, vector<16x64xf32>,
    %121 = vector.extract_strided_slice %110 {offsets = [80, 0], sizes = [16, 64], strides = [1, 1]} : vector<144x64xf32> to vector<16x64xf32>
    %c0_107 = arith.constant 0 : index
    %c320_108 = arith.constant 320 : index
    %122 = vector.load %arg15[%c0_107, %c320_108] : memref<16x576xf32, #tpu.memory_space<vmem>>, vector<16x64xf32>
    tpu.vector_store %arg15[%c0_107, %c320_108], %121 {strides = array<i32>} : memref<16x576xf32, #tpu.memory_space<vmem>>, vector<16x64xf32>,
    %123 = vector.extract_strided_slice %110 {offsets = [96, 0], sizes = [16, 64], strides = [1, 1]} : vector<144x64xf32> to vector<16x64xf32>
    %c0_109 = arith.constant 0 : index
    %c384_110 = arith.constant 384 : index
    %124 = vector.load %arg15[%c0_109, %c384_110] : memref<16x576xf32, #tpu.memory_space<vmem>>, vector<16x64xf32>
    tpu.vector_store %arg15[%c0_109, %c384_110], %123 {strides = array<i32>} : memref<16x576xf32, #tpu.memory_space<vmem>>, vector<16x64xf32>,
    %125 = vector.extract_strided_slice %110 {offsets = [112, 0], sizes = [16, 64], strides = [1, 1]} : vector<144x64xf32> to vector<16x64xf32>
    %c0_111 = arith.constant 0 : index
    %c448_112 = arith.constant 448 : index
    %126 = vector.load %arg15[%c0_111, %c448_112] : memref<16x576xf32, #tpu.memory_space<vmem>>, vector<16x64xf32>
    tpu.vector_store %arg15[%c0_111, %c448_112], %125 {strides = array<i32>} : memref<16x576xf32, #tpu.memory_space<vmem>>, vector<16x64xf32>,
    %127 = vector.extract_strided_slice %110 {offsets = [128, 0], sizes = [16, 64], strides = [1, 1]} : vector<144x64xf32> to vector<16x64xf32>
    %c0_113 = arith.constant 0 : index
    %c512_114 = arith.constant 512 : index
    %128 = vector.load %arg15[%c0_113, %c512_114] : memref<16x576xf32, #tpu.memory_space<vmem>>, vector<16x64xf32>
    tpu.vector_store %arg15[%c0_113, %c512_114], %127 {strides = array<i32>} : memref<16x576xf32, #tpu.memory_space<vmem>>, vector<16x64xf32>,
    %c0_115 = arith.constant 0 : index
    %c0_116 = arith.constant 0 : index
    %129 = vector.load %arg15[%c0_115, %c0_116] : memref<16x576xf32, #tpu.memory_space<vmem>>, vector<16x576xf32>
    %c0_117 = arith.constant 0 : index
    %c0_118 = arith.constant 0 : index
    %130 = vector.load %arg10[%c0_117, %c0_118] : memref<576x64xf32, #tpu.memory_space<vmem>>, vector<576x64xf32>
    %cst_119 = arith.constant dense<0.000000e+00> : vector<16x64xf32>
    %131 = tpu.matmul %129, %130, %cst_119 {dimension_numbers = #tpu.dot_dimension_numbers<[1], [0], [0], [1], [0, 0, 1, 1], [], []>} : vector<16x576xf32>, vector<576x64xf32>, vector<16x64xf32> -> vector<16x64xf32>
    %cst_120 = arith.constant 0.000000e+00 : f32
    %132 = vector.broadcast %cst_120 : f32 to vector<16x64xf32>
    %133 = arith.maximumf %131, %132 : vector<16x64xf32>
    %c0_121 = arith.constant 0 : index
    %c0_122 = arith.constant 0 : index
    %134 = vector.load %arg11[%c0_121, %c0_122] : memref<64x64xf32, #tpu.memory_space<vmem>>, vector<64x64xf32>
    %cst_123 = arith.constant dense<0.000000e+00> : vector<16x64xf32>
    %135 = tpu.matmul %133, %134, %cst_123 {dimension_numbers = #tpu.dot_dimension_numbers<[1], [0], [0], [1], [0, 0, 1, 1], [], []>} : vector<16x64xf32>, vector<64x64xf32>, vector<16x64xf32> -> vector<16x64xf32>
    %136 = arith.addf %106, %135 : vector<16x64xf32>
    %cst_124 = arith.constant 0.000000e+00 : f32
    %137 = vector.broadcast %cst_124 : f32 to vector<16x64xf32>
    %138 = arith.maximumf %136, %137 : vector<16x64xf32>
    %c0_125 = arith.constant 0 : index
    %c0_126 = arith.constant 0 : index
    %c0_127 = arith.constant 0 : index
    %139 = vector.load %arg12[%c0_125, %c0_126, %c0_127] : memref<1x16x64xf32, #tpu.memory_space<vmem>>, vector<1x16x64xf32>
    %140 = vector.shape_cast %139 : vector<1x16x64xf32> to vector<16x64xf32>
    %141 = vector.shape_cast %138 : vector<16x64xf32> to vector<1x16x64xf32>
    tpu.vector_store %arg12[%c0_125, %c0_126, %c0_127], %141 {strides = array<i32>} : memref<1x16x64xf32, #tpu.memory_space<vmem>>, vector<1x16x64xf32>,
    return
  }
  func.func @transform_0(%arg0: i32) -> (i32, i32, i32) {
    %c0_i32 = arith.constant 0 : i32
    %c0_i32_0 = arith.constant 0 : i32
    %c0_i32_1 = arith.constant 0 : i32
    return %arg0, %c0_i32, %c0_i32_0 : i32, i32, i32
  }
  func.func @transform_1(%arg0: i32) -> (i32, i32) {
    %c0_i32 = arith.constant 0 : i32
    %c0_i32_0 = arith.constant 0 : i32
    %c0_i32_1 = arith.constant 0 : i32
    return %c0_i32, %c0_i32_0 : i32, i32
  }
  func.func @transform_2(%arg0: i32) -> (i32, i32) {
    %c0_i32 = arith.constant 0 : i32
    %c0_i32_0 = arith.constant 0 : i32
    %c0_i32_1 = arith.constant 0 : i32
    return %c0_i32, %c0_i32_0 : i32, i32
  }
  func.func @transform_3(%arg0: i32) -> (i32, i32) {
    %c0_i32 = arith.constant 0 : i32
    %c0_i32_0 = arith.constant 0 : i32
    %c0_i32_1 = arith.constant 0 : i32
    return %c0_i32, %c0_i32_0 : i32, i32
  }
  func.func @transform_4(%arg0: i32) -> (i32, i32) {
    %c0_i32 = arith.constant 0 : i32
    %c0_i32_0 = arith.constant 0 : i32
    %c0_i32_1 = arith.constant 0 : i32
    return %c0_i32, %c0_i32_0 : i32, i32
  }
  func.func @transform_5(%arg0: i32) -> (i32, i32) {
    %c0_i32 = arith.constant 0 : i32
    %c0_i32_0 = arith.constant 0 : i32
    %c0_i32_1 = arith.constant 0 : i32
    return %c0_i32, %c0_i32_0 : i32, i32
  }
  func.func @transform_6(%arg0: i32) -> (i32, i32) {
    %c0_i32 = arith.constant 0 : i32
    %c0_i32_0 = arith.constant 0 : i32
    %c0_i32_1 = arith.constant 0 : i32
    return %c0_i32, %c0_i32_0 : i32, i32
  }
  func.func @transform_7(%arg0: i32) -> (i32, i32) {
    %c0_i32 = arith.constant 0 : i32
    %c0_i32_0 = arith.constant 0 : i32
    %c0_i32_1 = arith.constant 0 : i32
    return %c0_i32, %c0_i32_0 : i32, i32
  }
  func.func @transform_8(%arg0: i32) -> (i32, i32) {
    %c0_i32 = arith.constant 0 : i32
    %c0_i32_0 = arith.constant 0 : i32
    %c0_i32_1 = arith.constant 0 : i32
    return %c0_i32, %c0_i32_0 : i32, i32
  }
  func.func @transform_9(%arg0: i32) -> (i32, i32) {
    %c0_i32 = arith.constant 0 : i32
    %c0_i32_0 = arith.constant 0 : i32
    %c0_i32_1 = arith.constant 0 : i32
    return %c0_i32, %c0_i32_0 : i32, i32
  }
  func.func @transform_10(%arg0: i32) -> (i32, i32) {
    %c0_i32 = arith.constant 0 : i32
    %c0_i32_0 = arith.constant 0 : i32
    %c0_i32_1 = arith.constant 0 : i32
    return %c0_i32, %c0_i32_0 : i32, i32
  }
  func.func @transform_11(%arg0: i32) -> (i32, i32, i32) {
    %c0_i32 = arith.constant 0 : i32
    %c0_i32_0 = arith.constant 0 : i32
    %c0_i32_1 = arith.constant 0 : i32
    return %arg0, %c0_i32, %c0_i32_0 : i32, i32, i32
  }
}

</mosaic_0001>

<llo_original>
// kernel: encoder_forward.1
$region0: #{encoder_forward.1}
  #allocation0 [shape = 'u32[]', space=smem, size = 0x4, offset = 0x4, fixed_abs, tag = 'smem constant byte address 0x4 - core index']
  #allocation1 [shape = 'u32[72,128]{1,0:T(1,128)}', space=vmem, size = 0x9000, scoped, tag = 'internal scratch']
  #allocation2 [shape = 'f32[16,512]{1,0:T(8,128)}', space=vmem, size = 0x8000, scoped, tag = 'scratch operand']
  #allocation3 [shape = 'f32[16,576]{1,0:T(8,128)}', space=vmem, size = 0xa000, scoped, tag = 'scratch operand']
  #allocation4 [shape = 'f32[16,576]{1,0:T(8,128)}', space=vmem, size = 0xa000, scoped, tag = 'scratch operand']
  %s0 = inlined_call_operand.vmem [shape: f32[2,64,16], index: 0, kind: input, shape index: {}]
  %s1 = inlined_call_operand.vmem [shape: f32[16,32], index: 1, kind: input, shape index: {}]
  %s2 = inlined_call_operand.vmem [shape: f32[1,32], index: 2, kind: input, shape index: {}]
  %s3 = inlined_call_operand.vmem [shape: f32[256,64], index: 3, kind: input, shape index: {}]
  %s4 = inlined_call_operand.vmem [shape: f32[512,64], index: 4, kind: input, shape index: {}]
  %s5 = inlined_call_operand.vmem [shape: f32[1,64], index: 5, kind: input, shape index: {}]
  %s6 = inlined_call_operand.vmem [shape: f32[144,16], index: 6, kind: input, shape index: {}]
  %s7 = inlined_call_operand.vmem [shape: f32[576,64], index: 7, kind: input, shape index: {}]
  %s8 = inlined_call_operand.vmem [shape: f32[1,64], index: 8, kind: input, shape index: {}]
  %s9 = inlined_call_operand.vmem [shape: f32[576,64], index: 9, kind: input, shape index: {}]
  %s10 = inlined_call_operand.vmem [shape: f32[64,64], index: 10, kind: input, shape index: {}]
  %s11 = inlined_call_operand.hbm [shape: f32[2,16,64], index: 11, kind: output, shape index: {}]
  %s12 = sld [smem:[#allocation0]]
  $region77: #{encoder_forward.1} parent=0
    _
  %s14 = ssub.s32 1, %s12
  %s15 = scalar_select 0, %s14, %s12
  $region1: #{encoder_forward.1} parent=0
    #allocation5 [shape = 'u8[16384]{0}', space=vmem, size = 0x4000, scoped, tag = 'output window, operand 0']
    #allocation6 [shape = 's32[2]{0}', space=sflag, size = 0x8, scoped, tag = 'scoped memory for encoder_forward.1']
    %16 = vsyncpa [#allocation6], 0
    %s17 = scalar_lea.sflag [#allocation6], 1
    %18 = vsyncpa %s17, 0
    loop: start=0, step=1, limit=4
    $region2: #{encoder_forward.1} parent=1 // loop_pre_header
      _
    $region3: #{encoder_forward.1} parent=1 // loop_header
      %s20 = sphi 0, %s24
      %p21 = scmp.ge.s32.totalorder %s20, 4
      %s30 = sphi 0, %s32
      %s33 = sphi 0, %s30
      %s34 = sphi 0, %s33
      %s50 = sphi 0, %s34
      %s54 = sphi 0, %s54
      %s56 = sphi 0, %s54
      %s57 = sphi 0, %s56
      %s71 = sphi 0, %s57
      %s75 = sphi 0, %s75
      %s77 = sphi 0, %s75
      %s78 = sphi 0, %s77
      %s92 = sphi 0, %s78
      %s96 = sphi 0, %s96
      %s98 = sphi 0, %s96
      %s99 = sphi 0, %s98
      %s113 = sphi 0, %s99
      %s117 = sphi 0, %s117
      %s119 = sphi 0, %s117
      %s120 = sphi 0, %s119
      %s134 = sphi 0, %s120
      %s138 = sphi 0, %s138
      %s140 = sphi 0, %s138
      %s141 = sphi 0, %s140
      %s155 = sphi 0, %s141
      %s159 = sphi 0, %s159
      %s161 = sphi 0, %s159
      %s162 = sphi 0, %s161
      %s176 = sphi 0, %s162
      %s180 = sphi 0, %s180
      %s182 = sphi 0, %s180
      %s183 = sphi 0, %s182
      %s197 = sphi 0, %s183
      %s201 = sphi 0, %s201
      %s203 = sphi 0, %s201
      %s204 = sphi 0, %s203
      %s218 = sphi 0, %s204
      %s222 = sphi 0, %s222
      %s224 = sphi 0, %s222
      %s225 = sphi 0, %s224
      %s239 = sphi 0, %s225
      %s243 = sphi 0, %s243
      %s245 = sphi 0, %s243
      %s246 = sphi 0, %s245
      %s260 = sphi 0, %s246
      %s266 = sphi 0, %s268
      %s269 = sphi 0, %s266
      %s270 = sphi 0, %s269
      %s286 = sphi 0, %s270
    $region4: #{encoder_forward.1} parent=1 // loop_header_branch
      %23 = sbr.rel (%p21) target = $region8
    $region5: #{encoder_forward.1} parent=1 // loop_body
      %s25 = ssub.s32 %s20, 1
      %s26 = ssub.s32 %s20, 2
      %s27 = sadd.s32 %s20, 1
      %s28 = ssub.s32 %s20, %s27
      %p29 = scmp.eq.s32.totalorder %s28, 0
      %s31 = sadd.s32 %s30, 1
      %s32 = scalar_select %p29, %s30, %s31
      %p35 = pneg %p29
      %p36 = scmp.eq.s32.totalorder %s20, 1
      %p37 = por %p35, %p36
      %p38 = scmp.ne.s32.totalorder %s30, %s33
      %p39 = scmp.eq.s32.totalorder %s20, 0
      %p40 = por %p38, %p39
      %p41 = scmp.ne.s32.totalorder %s30, %s33
      %p42 = scmp.eq.s32.totalorder %s25, 1
      %p43 = por %p41, %p42
      %p44 = scmp.ne.s32.totalorder %s33, %s34
      %p45 = scmp.eq.s32.totalorder %s25, 0
      %p46 = por %p44, %p45
      %p47 = scmp.ne.s32.totalorder %s33, %s34
      %p48 = scmp.eq.s32.totalorder %s26, 1
      %p49 = por %p47, %p48
      %p51 = scmp.ne.s32.totalorder %s34, %s50
      %p52 = scmp.eq.s32.totalorder %s26, 0
      %p53 = por %p51, %p52
      %s55 = sadd.s32 %s54, 1
      %p58 = scmp.eq.s32.totalorder %s20, 1
      %p59 = scmp.ne.s32.totalorder %s54, %s56
      %p60 = scmp.eq.s32.totalorder %s20, 0
      %p61 = por %p59, %p60
      %p62 = scmp.ne.s32.totalorder %s54, %s56
      %p63 = scmp.eq.s32.totalorder %s25, 1
      %p64 = por %p62, %p63
      %p65 = scmp.ne.s32.totalorder %s56, %s57
      %p66 = scmp.eq.s32.totalorder %s25, 0
      %p67 = por %p65, %p66
      %p68 = scmp.ne.s32.totalorder %s56, %s57
      %p69 = scmp.eq.s32.totalorder %s26, 1
      %p70 = por %p68, %p69
      %p72 = scmp.ne.s32.totalorder %s57, %s71
      %p73 = scmp.eq.s32.totalorder %s26, 0
      %p74 = por %p72, %p73
      %s76 = sadd.s32 %s75, 1
      %p79 = scmp.eq.s32.totalorder %s20, 1
      %p80 = scmp.ne.s32.totalorder %s75, %s77
      %p81 = scmp.eq.s32.totalorder %s20, 0
      %p82 = por %p80, %p81
      %p83 = scmp.ne.s32.totalorder %s75, %s77
      %p84 = scmp.eq.s32.totalorder %s25, 1
      %p85 = por %p83, %p84
      %p86 = scmp.ne.s32.totalorder %s77, %s78
      %p87 = scmp.eq.s32.totalorder %s25, 0
      %p88 = por %p86, %p87
      %p89 = scmp.ne.s32.totalorder %s77, %s78
      %p90 = scmp.eq.s32.totalorder %s26, 1
      %p91 = por %p89, %p90
      %p93 = scmp.ne.s32.totalorder %s78, %s92
      %p94 = scmp.eq.s32.totalorder %s26, 0
      %p95 = por %p93, %p94
      %s97 = sadd.s32 %s96, 1
      %p100 = scmp.eq.s32.totalorder %s20, 1
      %p101 = scmp.ne.s32.totalorder %s96, %s98
      %p102 = scmp.eq.s32.totalorder %s20, 0
      %p103 = por %p101, %p102
      %p104 = scmp.ne.s32.totalorder %s96, %s98
      %p105 = scmp.eq.s32.totalorder %s25, 1
      %p106 = por %p104, %p105
      %p107 = scmp.ne.s32.totalorder %s98, %s99
      %p108 = scmp.eq.s32.totalorder %s25, 0
      %p109 = por %p107, %p108
      %p110 = scmp.ne.s32.totalorder %s98, %s99
      %p111 = scmp.eq.s32.totalorder %s26, 1
      %p112 = por %p110, %p111
      %p114 = scmp.ne.s32.totalorder %s99, %s113
      %p115 = scmp.eq.s32.totalorder %s26, 0
      %p116 = por %p114, %p115
      %s118 = sadd.s32 %s117, 1
      %p121 = scmp.eq.s32.totalorder %s20, 1
      %p122 = scmp.ne.s32.totalorder %s117, %s119
      %p123 = scmp.eq.s32.totalorder %s20, 0
      %p124 = por %p122, %p123
      %p125 = scmp.ne.s32.totalorder %s117, %s119
      %p126 = scmp.eq.s32.totalorder %s25, 1
      %p127 = por %p125, %p126
      %p128 = scmp.ne.s32.totalorder %s119, %s120
      %p129 = scmp.eq.s32.totalorder %s25, 0
      %p130 = por %p128, %p129
      %p131 = scmp.ne.s32.totalorder %s119, %s120
      %p132 = scmp.eq.s32.totalorder %s26, 1
      %p133 = por %p131, %p132
      %p135 = scmp.ne.s32.totalorder %s120, %s134
      %p136 = scmp.eq.s32.totalorder %s26, 0
      %p137 = por %p135, %p136
      %s139 = sadd.s32 %s138, 1
      %p142 = scmp.eq.s32.totalorder %s20, 1
      %p143 = scmp.ne.s32.totalorder %s138, %s140
      %p144 = scmp.eq.s32.totalorder %s20, 0
      %p145 = por %p143, %p144
      %p146 = scmp.ne.s32.totalorder %s138, %s140
      %p147 = scmp.eq.s32.totalorder %s25, 1
      %p148 = por %p146, %p147
      %p149 = scmp.ne.s32.totalorder %s140, %s141
      %p150 = scmp.eq.s32.totalorder %s25, 0
      %p151 = por %p149, %p150
      %p152 = scmp.ne.s32.totalorder %s140, %s141
      %p153 = scmp.eq.s32.totalorder %s26, 1
      %p154 = por %p152, %p153
      %p156 = scmp.ne.s32.totalorder %s141, %s155
      %p157 = scmp.eq.s32.totalorder %s26, 0
      %p158 = por %p156, %p157
      %s160 = sadd.s32 %s159, 1
      %p163 = scmp.eq.s32.totalorder %s20, 1
      %p164 = scmp.ne.s32.totalorder %s159, %s161
      %p165 = scmp.eq.s32.totalorder %s20, 0
      %p166 = por %p164, %p165
      %p167 = scmp.ne.s32.totalorder %s159, %s161
      %p168 = scmp.eq.s32.totalorder %s25, 1
      %p169 = por %p167, %p168
      %p170 = scmp.ne.s32.totalorder %s161, %s162
      %p171 = scmp.eq.s32.totalorder %s25, 0
      %p172 = por %p170, %p171
      %p173 = scmp.ne.s32.totalorder %s161, %s162
      %p174 = scmp.eq.s32.totalorder %s26, 1
      %p175 = por %p173, %p174
      %p177 = scmp.ne.s32.totalorder %s162, %s176
      %p178 = scmp.eq.s32.totalorder %s26, 0
      %p179 = por %p177, %p178
      %s181 = sadd.s32 %s180, 1
      %p184 = scmp.eq.s32.totalorder %s20, 1
      %p185 = scmp.ne.s32.totalorder %s180, %s182
      %p186 = scmp.eq.s32.totalorder %s20, 0
      %p187 = por %p185, %p186
      %p188 = scmp.ne.s32.totalorder %s180, %s182
      %p189 = scmp.eq.s32.totalorder %s25, 1
      %p190 = por %p188, %p189
      %p191 = scmp.ne.s32.totalorder %s182, %s183
      %p192 = scmp.eq.s32.totalorder %s25, 0
      %p193 = por %p191, %p192
      %p194 = scmp.ne.s32.totalorder %s182, %s183
      %p195 = scmp.eq.s32.totalorder %s26, 1
      %p196 = por %p194, %p195
      %p198 = scmp.ne.s32.totalorder %s183, %s197
      %p199 = scmp.eq.s32.totalorder %s26, 0
      %p200 = por %p198, %p199
      %s202 = sadd.s32 %s201, 1
      %p205 = scmp.eq.s32.totalorder %s20, 1
      %p206 = scmp.ne.s32.totalorder %s201, %s203
      %p207 = scmp.eq.s32.totalorder %s20, 0
      %p208 = por %p206, %p207
      %p209 = scmp.ne.s32.totalorder %s201, %s203
      %p210 = scmp.eq.s32.totalorder %s25, 1
      %p211 = por %p209, %p210
      %p212 = scmp.ne.s32.totalorder %s203, %s204
      %p213 = scmp.eq.s32.totalorder %s25, 0
      %p214 = por %p212, %p213
      %p215 = scmp.ne.s32.totalorder %s203, %s204
      %p216 = scmp.eq.s32.totalorder %s26, 1
      %p217 = por %p215, %p216
      %p219 = scmp.ne.s32.totalorder %s204, %s218
      %p220 = scmp.eq.s32.totalorder %s26, 0
      %p221 = por %p219, %p220
      %s223 = sadd.s32 %s222, 1
      %p226 = scmp.eq.s32.totalorder %s20, 1
      %p227 = scmp.ne.s32.totalorder %s222, %s224
      %p228 = scmp.eq.s32.totalorder %s20, 0
      %p229 = por %p227, %p228
      %p230 = scmp.ne.s32.totalorder %s222, %s224
      %p231 = scmp.eq.s32.totalorder %s25, 1
      %p232 = por %p230, %p231
      %p233 = scmp.ne.s32.totalorder %s224, %s225
      %p234 = scmp.eq.s32.totalorder %s25, 0
      %p235 = por %p233, %p234
      %p236 = scmp.ne.s32.totalorder %s224, %s225
      %p237 = scmp.eq.s32.totalorder %s26, 1
      %p238 = por %p236, %p237
      %p240 = scmp.ne.s32.totalorder %s225, %s239
      %p241 = scmp.eq.s32.totalorder %s26, 0
      %p242 = por %p240, %p241
      %s244 = sadd.s32 %s243, 1
      %p247 = scmp.eq.s32.totalorder %s20, 1
      %p248 = scmp.ne.s32.totalorder %s243, %s245
      %p249 = scmp.eq.s32.totalorder %s20, 0
      %p250 = por %p248, %p249
      %p251 = scmp.ne.s32.totalorder %s243, %s245
      %p252 = scmp.eq.s32.totalorder %s25, 1
      %p253 = por %p251, %p252
      %p254 = scmp.ne.s32.totalorder %s245, %s246
      %p255 = scmp.eq.s32.totalorder %s25, 0
      %p256 = por %p254, %p255
      %p257 = scmp.ne.s32.totalorder %s245, %s246
      %p258 = scmp.eq.s32.totalorder %s26, 1
      %p259 = por %p257, %p258
      %p261 = scmp.ne.s32.totalorder %s246, %s260
      %p262 = scmp.eq.s32.totalorder %s26, 0
      %p263 = por %p261, %p262
      %s264 = ssub.s32 %s20, %s27
      %p265 = scmp.eq.s32.totalorder %s264, 0
      %s267 = sadd.s32 %s266, 1
      %s268 = scalar_select %p265, %s266, %s267
      %p271 = pneg %p265
      %p272 = scmp.eq.s32.totalorder %s20, 1
      %p273 = por %p271, %p272
      %p274 = scmp.ne.s32.totalorder %s266, %s269
      %p275 = scmp.eq.s32.totalorder %s20, 0
      %p276 = por %p274, %p275
      %p277 = scmp.ne.s32.totalorder %s266, %s269
      %p278 = scmp.eq.s32.totalorder %s25, 1
      %p279 = por %p277, %p278
      %p280 = scmp.ne.s32.totalorder %s269, %s270
      %p281 = scmp.eq.s32.totalorder %s25, 0
      %p282 = por %p280, %p281
      %p283 = scmp.ne.s32.totalorder %s269, %s270
      %p284 = scmp.eq.s32.totalorder %s26, 1
      %p285 = por %p283, %p284
      %p287 = scmp.ne.s32.totalorder %s270, %s286
      %p288 = scmp.eq.s32.totalorder %s26, 0
      %p289 = por %p287, %p288
      %p290 = scmp.le.s32.totalorder 1, %s20
      %p291 = scmp.lt.s32.totalorder %s20, 3
      %p292 = pnand %p290, %p291
      %p293 = pneg %p292
      // Predicated region
      $region9: #{encoder_forward.1} parent=5 // pred_check
        _
      $region10: #{encoder_forward.1} parent=5 // pred_check_branch
        %295 = sbr.rel (%p292) target = $region12
      $region11: #{encoder_forward.1} parent=5 // pred_region
        %s296 = ssub.s32 %s20, 1
        // Predicated region
        $region13: #{encoder_forward.1} parent=11 // pred_check
          %p297 = pneg %p67
        $region14: #{encoder_forward.1} parent=11 // pred_check_branch
          %299 = sbr.rel (%p297) target = $region16
        $region15: #{encoder_forward.1} parent=11 // pred_region
          _
        $region16: #{encoder_forward.1} parent=11 // pred_fallthru
          _
        // Predicated region
        $region17: #{encoder_forward.1} parent=11 // pred_check
          %p300 = pneg %p88
        $region18: #{encoder_forward.1} parent=11 // pred_check_branch
          %302 = sbr.rel (%p300) target = $region20
        $region19: #{encoder_forward.1} parent=11 // pred_region
          _
        $region20: #{encoder_forward.1} parent=11 // pred_fallthru
          _
        // Predicated region
        $region21: #{encoder_forward.1} parent=11 // pred_check
          %p303 = pneg %p109
        $region22: #{encoder_forward.1} parent=11 // pred_check_branch
          %305 = sbr.rel (%p303) target = $region24
        $region23: #{encoder_forward.1} parent=11 // pred_region
          _
        $region24: #{encoder_forward.1} parent=11 // pred_fallthru
          _
        // Predicated region
        $region25: #{encoder_forward.1} parent=11 // pred_check
          %p306 = pneg %p130
        $region26: #{encoder_forward.1} parent=11 // pred_check_branch
          %308 = sbr.rel (%p306) target = $region28
        $region27: #{encoder_forward.1} parent=11 // pred_region
          _
        $region28: #{encoder_forward.1} parent=11 // pred_fallthru
          _
        // Predicated region
        $region29: #{encoder_forward.1} parent=11 // pred_check
          %p309 = pneg %p151
        $region30: #{encoder_forward.1} parent=11 // pred_check_branch
          %311 = sbr.rel (%p309) target = $region32
        $region31: #{encoder_forward.1} parent=11 // pred_region
          _
        $region32: #{encoder_forward.1} parent=11 // pred_fallthru
          _
        // Predicated region
        $region33: #{encoder_forward.1} parent=11 // pred_check
          %p312 = pneg %p172
        $region34: #{encoder_forward.1} parent=11 // pred_check_branch
          %314 = sbr.rel (%p312) target = $region36
        $region35: #{encoder_forward.1} parent=11 // pred_region
          _
        $region36: #{encoder_forward.1} parent=11 // pred_fallthru
          _
        // Predicated region
        $region37: #{encoder_forward.1} parent=11 // pred_check
          %p315 = pneg %p193
        $region38: #{encoder_forward.1} parent=11 // pred_check_branch
          %317 = sbr.rel (%p315) target = $region40
        $region39: #{encoder_forward.1} parent=11 // pred_region
          _
        $region40: #{encoder_forward.1} parent=11 // pred_fallthru
          _
        // Predicated region
        $region41: #{encoder_forward.1} parent=11 // pred_check
          %p318 = pneg %p214
        $region42: #{encoder_forward.1} parent=11 // pred_check_branch
          %320 = sbr.rel (%p318) target = $region44
        $region43: #{encoder_forward.1} parent=11 // pred_region
          _
        $region44: #{encoder_forward.1} parent=11 // pred_fallthru
          _
        // Predicated region
        $region45: #{encoder_forward.1} parent=11 // pred_check
          %p321 = pneg %p235
        $region46: #{encoder_forward.1} parent=11 // pred_check_branch
          %323 = sbr.rel (%p321) target = $region48
        $region47: #{encoder_forward.1} parent=11 // pred_region
          _
        $region48: #{encoder_forward.1} parent=11 // pred_fallthru
          _
        // Predicated region
        $region49: #{encoder_forward.1} parent=11 // pred_check
          %p324 = pneg %p256
        $region50: #{encoder_forward.1} parent=11 // pred_check_branch
          %326 = sbr.rel (%p324) target = $region52
        $region51: #{encoder_forward.1} parent=11 // pred_region
          _
        $region52: #{encoder_forward.1} parent=11 // pred_fallthru
          _
      $region12: #{encoder_forward.1} parent=5 // pred_fallthru
        _
      %p327 = scmp.lt.s32.totalorder %s20, 2
      // Predicated region
      $region53: #{encoder_forward.1} parent=5 // pred_check
        %p328 = pneg %p327
      $region54: #{encoder_forward.1} parent=5 // pred_check_branch
        %330 = sbr.rel (%p328) target = $region56
      $region55: #{encoder_forward.1} parent=5 // pred_region
        // Predicated region
        $region57: #{encoder_forward.1} parent=55 // pred_check
          %p331 = pneg %p40
        $region58: #{encoder_forward.1} parent=55 // pred_check_branch
          %333 = sbr.rel (%p331) target = $region60
        $region59: #{encoder_forward.1} parent=55 // pred_region
          %p334 = scmp.lt.s32.totalorder %s20, 1
          %s335 = scalar_select %p334, %s20, 1
          %s336 = smul.addr %s335, 8
          %s337 = smul.addr %s336, 8
          %s338 = scalar_lea.vmem %s0, %s337
        $region60: #{encoder_forward.1} parent=55 // pred_fallthru
          _
      $region56: #{encoder_forward.1} parent=5 // pred_fallthru
        _
      %p339 = scmp.le.s32.totalorder 1, %s20
      %p340 = scmp.lt.s32.totalorder %s20, 3
      %p341 = pnand %p339, %p340
      %p342 = pneg %p341
      // Predicated region
      $region61: #{encoder_forward.1} parent=5 // pred_check
        _
      $region62: #{encoder_forward.1} parent=5 // pred_check_branch
        %344 = sbr.rel (%p341) target = $region64
      $region63: #{encoder_forward.1} parent=5 // pred_region
        %s345 = ssub.s32 %s20, 1
        %p346 = scmp.lt.s32.totalorder %s25, 1
        %s347 = scalar_select %p346, %s25, 1
        %s348 = smul.addr %s347, 8
        %s349 = smul.addr %s348, 8
        %s350 = scalar_lea.vmem %s0, %s349
        %p351 = pneg %p46
        %p352 = pneg %p43
        %p353 = pneg %p67
        %p354 = pneg %p64
        %p355 = pneg %p88
        %p356 = pneg %p85
        %p357 = pneg %p109
        %p358 = pneg %p106
        %p359 = pneg %p130
        %p360 = pneg %p127
        %p361 = pneg %p151
        %p362 = pneg %p148
        %p363 = pneg %p172
        %p364 = pneg %p169
        %p365 = pneg %p193
        %p366 = pneg %p190
        %p367 = pneg %p214
        %p368 = pneg %p211
        %p369 = pneg %p235
        %p370 = pneg %p232
        %p371 = pneg %p256
        %p372 = pneg %p253
        %p373 = pneg %p282
        %p374 = pneg %p279
        %s375 = sand.u32 %s269, 1
        %s376 = scalar_lea.sflag [#allocation6], %s375
        %s377 = sand.u32 %s269, 1
        %s378 = smul.addr %s377, 16
        %s379 = scalar_lea.vmem [#allocation5], %s378
        %p380 = scmp.lt.s32.totalorder %s25, 1
        %s381 = scalar_select %p380, %s25, 1
        %s382 = smul.addr %s381, 8
        %s383 = smul.addr %s382, 8
        %s384 = scalar_lea.vmem %s0, %s383
        %v385 = vld [vmem:[%s384] sm:$0xff]
        %v386 = vld [vmem:[%s384 + $0x8] sm:$0xff]
        %v387 = vld [vmem:[%s384 + $0x10] sm:$0xff]
        %v388 = vld [vmem:[%s384 + $0x18] sm:$0xff]
        %v389 = vld [vmem:[%s384 + $0x20] sm:$0xff]
        %v390 = vld [vmem:[%s384 + $0x28] sm:$0xff]
        %v391 = vld [vmem:[%s384 + $0x30] sm:$0xff]
        %v392 = vld [vmem:[%s384 + $0x38] sm:$0xff]
        %v393 = vld [vmem:[%s1] sm:$0xff]
        %v394 = vld [vmem:[%s1 + $0x8] sm:$0xff]
        %v395 = vld [vmem:[%s2] sm:$0x1]
        %v397 = vperm.slane %v395, 0
        %vm399 = vcmask 130048
        %v401 = vsel %vm399, %v385, 0
        %v404 = vsel %vm399, %v386, 0
        %v407 = vsel %vm399, %v387, 0
        %v410 = vsel %vm399, %v388, 0
        %v413 = vsel %vm399, %v389, 0
        %v416 = vsel %vm399, %v390, 0
        %v419 = vsel %vm399, %v391, 0
        %v422 = vsel %vm399, %v392, 0
        %424 = vmatpush.msra.mxu0 0.0
        %425 = vmatpush.msra.mxu0 0.0
        %426 = vmatpush.msra.mxu0 0.0
        %427 = vmatpush.msra.mxu0 0.0
        %428 = vmatpush.msra.mxu0 0.0
        %429 = vmatpush.msra.mxu0 0.0
        %430 = vmatpush.msra.mxu0 0.0
        %431 = vmatpush.msra.mxu0 0.0
        %432 = vmatpush.msra.mxu0 0.0
        %433 = vmatpush.msra.mxu0 0.0
        %434 = vmatpush.msra.mxu0 0.0
        %435 = vmatpush.msra.mxu0 0.0
        %436 = vmatpush.msra.mxu0 0.0
        %437 = vmatpush.msra.mxu0 0.0
        %438 = vmatpush.msra.mxu0 %v394
        %439 = vmatpush.msra.mxu0 %v393
        %440 = vmatmul.f32.gmra.mxu0 %v401
        %v441 = vpop.f32.mrf.mxu0
        %v442 = vadd.f32 %v397, %v441
        %443 = vmatmul.f32.gmra.mxu0 %v404
        %v444 = vpop.f32.mrf.mxu0
        %v445 = vadd.f32 %v397, %v444
        %446 = vmatmul.f32.gmra.mxu0 %v407
        %v447 = vpop.f32.mrf.mxu0
        %v448 = vadd.f32 %v397, %v447
        %449 = vmatmul.f32.gmra.mxu0 %v410
        %v450 = vpop.f32.mrf.mxu0
        %v451 = vadd.f32 %v397, %v450
        %452 = vmatmul.f32.gmra.mxu0 %v413
        %v453 = vpop.f32.mrf.mxu0
        %v454 = vadd.f32 %v397, %v453
        %455 = vmatmul.f32.gmra.mxu0 %v416
        %v456 = vpop.f32.mrf.mxu0
        %v457 = vadd.f32 %v397, %v456
        %458 = vmatmul.f32.gmra.mxu0 %v419
        %v459 = vpop.f32.mrf.mxu0
        %v460 = vadd.f32 %v397, %v459
        %461 = vmatmul.f32.gmra.mxu0 %v422
        %v462 = vpop.f32.mrf.mxu0
        %v463 = vadd.f32 %v397, %v462
        %464 = vdwg.mxu0
        %v465 = vmax.f32 %v442, 0.0
        %v466 = vmax.f32 %v445, 0.0
        %v467 = vmax.f32 %v448, 0.0
        %v468 = vmax.f32 %v451, 0.0
        %v469 = vmax.f32 %v454, 0.0
        %v470 = vmax.f32 %v457, 0.0
        %v471 = vmax.f32 %v460, 0.0
        %v472 = vmax.f32 %v463, 0.0
        %v473 = vld [vmem:[%s3] sm:$0xff]
        %v474 = vld [vmem:[%s3 + $0x8] sm:$0xff]
        %v475 = vld [vmem:[%s3 + $0x10] sm:$0xff]
        %v476 = vld [vmem:[%s3 + $0x18] sm:$0xff]
        %v477 = vld [vmem:[%s3 + $0x20] sm:$0xff]
        %v478 = vld [vmem:[%s3 + $0x28] sm:$0xff]
        %v479 = vld [vmem:[%s3 + $0x30] sm:$0xff]
        %v480 = vld [vmem:[%s3 + $0x38] sm:$0xff]
        %v481 = vld [vmem:[%s3 + $0x40] sm:$0xff]
        %v482 = vld [vmem:[%s3 + $0x48] sm:$0xff]
        %v483 = vld [vmem:[%s3 + $0x50] sm:$0xff]
        %v484 = vld [vmem:[%s3 + $0x58] sm:$0xff]
        %v485 = vld [vmem:[%s3 + $0x60] sm:$0xff]
        %v486 = vld [vmem:[%s3 + $0x68] sm:$0xff]
        %v487 = vld [vmem:[%s3 + $0x70] sm:$0xff]
        %v488 = vld [vmem:[%s3 + $0x78] sm:$0xff]
        %v489 = vld [vmem:[%s3 + $0x80] sm:$0xff]
        %v490 = vld [vmem:[%s3 + $0x88] sm:$0xff]
        %v491 = vld [vmem:[%s3 + $0x90] sm:$0xff]
        %v492 = vld [vmem:[%s3 + $0x98] sm:$0xff]
        %v493 = vld [vmem:[%s3 + $0xa0] sm:$0xff]
        %v494 = vld [vmem:[%s3 + $0xa8] sm:$0xff]
        %v495 = vld [vmem:[%s3 + $0xb0] sm:$0xff]
        %v496 = vld [vmem:[%s3 + $0xb8] sm:$0xff]
        %v497 = vld [vmem:[%s3 + $0xc0] sm:$0xff]
        %v498 = vld [vmem:[%s3 + $0xc8] sm:$0xff]
        %v499 = vld [vmem:[%s3 + $0xd0] sm:$0xff]
        %v500 = vld [vmem:[%s3 + $0xd8] sm:$0xff]
        %v501 = vld [vmem:[%s3 + $0xe0] sm:$0xff]
        %v502 = vld [vmem:[%s3 + $0xe8] sm:$0xff]
        %v503 = vld [vmem:[%s3 + $0xf0] sm:$0xff]
        %v504 = vld [vmem:[%s3 + $0xf8] sm:$0xff]
        %vm505 = vcmask 523264
        %v507 = vsel %vm505, %v473, 0
        %v510 = vsel %vm505, %v474, 0
        %v513 = vsel %vm505, %v475, 0
        %v516 = vsel %vm505, %v476, 0
        %v519 = vsel %vm505, %v477, 0
        %v522 = vsel %vm505, %v478, 0
        %v525 = vsel %vm505, %v479, 0
        %v528 = vsel %vm505, %v480, 0
        %v531 = vsel %vm505, %v481, 0
        %v534 = vsel %vm505, %v482, 0
        %v537 = vsel %vm505, %v483, 0
        %v540 = vsel %vm505, %v484, 0
        %v543 = vsel %vm505, %v485, 0
        %v546 = vsel %vm505, %v486, 0
        %v549 = vsel %vm505, %v487, 0
        %v552 = vsel %vm505, %v488, 0
        %v555 = vsel %vm505, %v489, 0
        %v558 = vsel %vm505, %v490, 0
        %v561 = vsel %vm505, %v491, 0
        %v564 = vsel %vm505, %v492, 0
        %v567 = vsel %vm505, %v493, 0
        %v570 = vsel %vm505, %v494, 0
        %v573 = vsel %vm505, %v495, 0
        %v576 = vsel %vm505, %v496, 0
        %v579 = vsel %vm505, %v497, 0
        %v582 = vsel %vm505, %v498, 0
        %v585 = vsel %vm505, %v499, 0
        %v588 = vsel %vm505, %v500, 0
        %v591 = vsel %vm505, %v501, 0
        %v594 = vsel %vm505, %v502, 0
        %v597 = vsel %vm505, %v503, 0
        %v600 = vsel %vm505, %v504, 0
        %602 = vmatpush.msra.mxu0 0.0
        %603 = vmatpush.msra.mxu0 0.0
        %604 = vmatpush.msra.mxu0 0.0
        %605 = vmatpush.msra.mxu0 0.0
        %606 = vmatpush.msra.mxu0 0.0
        %607 = vmatpush.msra.mxu0 0.0
        %608 = vmatpush.msra.mxu0 0.0
        %609 = vmatpush.msra.mxu0 0.0
        %610 = vmatpush.msra.mxu0 %v472
        %611 = vmatpush.msra.mxu0 %v471
        %612 = vmatpush.msra.mxu0 %v470
        %613 = vmatpush.msra.mxu0 %v469
        %614 = vmatpush.msra.mxu0 %v468
        %615 = vmatpush.msra.mxu0 %v467
        %616 = vmatpush.msra.mxu0 %v466
        %617 = vmatpush.msra.mxu0 %v465
        %618 = vmatmul.f32.gmra.mxu0 %v507
        %v619 = vpop.f32.mrf.mxu0
        %v620 = vadd.f32 0.0, %v619
        %621 = vmatmul.f32.gmra.mxu0 %v510
        %v622 = vpop.f32.mrf.mxu0
        %v623 = vadd.f32 0.0, %v622
        %624 = vmatmul.f32.gmra.mxu0 %v513
        %v625 = vpop.f32.mrf.mxu0
        %v626 = vadd.f32 0.0, %v625
        %627 = vmatmul.f32.gmra.mxu0 %v516
        %v628 = vpop.f32.mrf.mxu0
        %v629 = vadd.f32 0.0, %v628
        %630 = vmatmul.f32.gmra.mxu0 %v519
        %v631 = vpop.f32.mrf.mxu0
        %v632 = vadd.f32 0.0, %v631
        %633 = vmatmul.f32.gmra.mxu0 %v522
        %v634 = vpop.f32.mrf.mxu0
        %v635 = vadd.f32 0.0, %v634
        %636 = vmatmul.f32.gmra.mxu0 %v525
        %v637 = vpop.f32.mrf.mxu0
        %v638 = vadd.f32 0.0, %v637
        %639 = vmatmul.f32.gmra.mxu0 %v528
        %v640 = vpop.f32.mrf.mxu0
        %v641 = vadd.f32 0.0, %v640
        %642 = vmatmul.f32.gmra.mxu0 %v531
        %v643 = vpop.f32.mrf.mxu0
        %v644 = vadd.f32 0.0, %v643
        %645 = vmatmul.f32.gmra.mxu0 %v534
        %v646 = vpop.f32.mrf.mxu0
        %v647 = vadd.f32 0.0, %v646
        %648 = vmatmul.f32.gmra.mxu0 %v537
        %v649 = vpop.f32.mrf.mxu0
        %v650 = vadd.f32 0.0, %v649
        %651 = vmatmul.f32.gmra.mxu0 %v540
        %v652 = vpop.f32.mrf.mxu0
        %v653 = vadd.f32 0.0, %v652
        %654 = vmatmul.f32.gmra.mxu0 %v543
        %v655 = vpop.f32.mrf.mxu0
        %v656 = vadd.f32 0.0, %v655
        %657 = vmatmul.f32.gmra.mxu0 %v546
        %v658 = vpop.f32.mrf.mxu0
        %v659 = vadd.f32 0.0, %v658
        %660 = vmatmul.f32.gmra.mxu0 %v549
        %v661 = vpop.f32.mrf.mxu0
        %v662 = vadd.f32 0.0, %v661
        %663 = vmatmul.f32.gmra.mxu0 %v552
        %v664 = vpop.f32.mrf.mxu0
        %v665 = vadd.f32 0.0, %v664
        %666 = vmatmul.f32.gmra.mxu0 %v555
        %v667 = vpop.f32.mrf.mxu0
        %v668 = vadd.f32 0.0, %v667
        %669 = vmatmul.f32.gmra.mxu0 %v558
        %v670 = vpop.f32.mrf.mxu0
        %v671 = vadd.f32 0.0, %v670
        %672 = vmatmul.f32.gmra.mxu0 %v561
        %v673 = vpop.f32.mrf.mxu0
        %v674 = vadd.f32 0.0, %v673
        %675 = vmatmul.f32.gmra.mxu0 %v564
        %v676 = vpop.f32.mrf.mxu0
        %v677 = vadd.f32 0.0, %v676
        %678 = vmatmul.f32.gmra.mxu0 %v567
        %v679 = vpop.f32.mrf.mxu0
        %v680 = vadd.f32 0.0, %v679
        %681 = vmatmul.f32.gmra.mxu0 %v570
        %v682 = vpop.f32.mrf.mxu0
        %v683 = vadd.f32 0.0, %v682
        %684 = vmatmul.f32.gmra.mxu0 %v573
        %v685 = vpop.f32.mrf.mxu0
        %v686 = vadd.f32 0.0, %v685
        %687 = vmatmul.f32.gmra.mxu0 %v576
        %v688 = vpop.f32.mrf.mxu0
        %v689 = vadd.f32 0.0, %v688
        %690 = vmatmul.f32.gmra.mxu0 %v579
        %v691 = vpop.f32.mrf.mxu0
        %v692 = vadd.f32 0.0, %v691
        %693 = vmatmul.f32.gmra.mxu0 %v582
        %v694 = vpop.f32.mrf.mxu0
        %v695 = vadd.f32 0.0, %v694
        %696 = vmatmul.f32.gmra.mxu0 %v585
        %v697 = vpop.f32.mrf.mxu0
        %v698 = vadd.f32 0.0, %v697
        %699 = vmatmul.f32.gmra.mxu0 %v588
        %v700 = vpop.f32.mrf.mxu0
        %v701 = vadd.f32 0.0, %v700
        %702 = vmatmul.f32.gmra.mxu0 %v591
        %v703 = vpop.f32.mrf.mxu0
        %v704 = vadd.f32 0.0, %v703
        %705 = vmatmul.f32.gmra.mxu0 %v594
        %v706 = vpop.f32.mrf.mxu0
        %v707 = vadd.f32 0.0, %v706
        %708 = vmatmul.f32.gmra.mxu0 %v597
        %v709 = vpop.f32.mrf.mxu0
        %v710 = vadd.f32 0.0, %v709
        %711 = vmatmul.f32.gmra.mxu0 %v600
        %v712 = vpop.f32.mrf.mxu0
        %v713 = vadd.f32 0.0, %v712
        %714 = vdwg.mxu0
        %vm715 = vcmask 261120
        %716 = vst.msk [vmem:[#allocation2] sm:$0xff] %vm715, %v620
        %717 = vst.msk [vmem:[#allocation2 + $0x20] sm:$0xff] %vm715, %v623
        %720 = vrot.lane.b32.xlu0 %v626, 32
        %v721 = vpop.permute.xlu0 %720
        %722 = vrot.lane.b32.xlu0 %v629, 32
        %v723 = vpop.permute.xlu0 %722
        %vm726 = vcmask 523520
        %727 = vst.msk [vmem:[#allocation2] sm:$0xff] %vm726, %v721
        %728 = vst.msk [vmem:[#allocation2 + $0x20] sm:$0xff] %vm726, %v723
        %731 = vrot.lane.b32.xlu0 %v632, 64
        %v732 = vpop.permute.xlu0 %731
        %733 = vrot.lane.b32.xlu0 %v635, 64
        %v734 = vpop.permute.xlu0 %733
        %vm737 = vcmask 785920
        %738 = vst.msk [vmem:[#allocation2] sm:$0xff] %vm737, %v732
        %739 = vst.msk [vmem:[#allocation2 + $0x20] sm:$0xff] %vm737, %v734
        %742 = vrot.lane.b32.xlu0 %v638, 96
        %v743 = vpop.permute.xlu0 %742
        %744 = vrot.lane.b32.xlu0 %v641, 96
        %v745 = vpop.permute.xlu0 %744
        %vm748 = vcmask 1048320
        %749 = vst.msk [vmem:[#allocation2] sm:$0xff] %vm748, %v743
        %750 = vst.msk [vmem:[#allocation2 + $0x20] sm:$0xff] %vm748, %v745
        %751 = vst.msk [vmem:[#allocation2 + $0x8] sm:$0xff] %vm715, %v644
        %752 = vst.msk [vmem:[#allocation2 + $0x28] sm:$0xff] %vm715, %v647
        %755 = vrot.lane.b32.xlu0 %v650, 32
        %v756 = vpop.permute.xlu0 %755
        %757 = vrot.lane.b32.xlu0 %v653, 32
        %v758 = vpop.permute.xlu0 %757
        %761 = vst.msk [vmem:[#allocation2 + $0x8] sm:$0xff] %vm726, %v756
        %762 = vst.msk [vmem:[#allocation2 + $0x28] sm:$0xff] %vm726, %v758
        %765 = vrot.lane.b32.xlu0 %v656, 64
        %v766 = vpop.permute.xlu0 %765
        %767 = vrot.lane.b32.xlu0 %v659, 64
        %v768 = vpop.permute.xlu0 %767
        %771 = vst.msk [vmem:[#allocation2 + $0x8] sm:$0xff] %vm737, %v766
        %772 = vst.msk [vmem:[#allocation2 + $0x28] sm:$0xff] %vm737, %v768
        %775 = vrot.lane.b32.xlu0 %v662, 96
        %v776 = vpop.permute.xlu0 %775
        %777 = vrot.lane.b32.xlu0 %v665, 96
        %v778 = vpop.permute.xlu0 %777
        %781 = vst.msk [vmem:[#allocation2 + $0x8] sm:$0xff] %vm748, %v776
        %782 = vst.msk [vmem:[#allocation2 + $0x28] sm:$0xff] %vm748, %v778
        %783 = vst.msk [vmem:[#allocation2 + $0x10] sm:$0xff] %vm715, %v668
        %784 = vst.msk [vmem:[#allocation2 + $0x30] sm:$0xff] %vm715, %v671
        %787 = vrot.lane.b32.xlu0 %v674, 32
        %v788 = vpop.permute.xlu0 %787
        %789 = vrot.lane.b32.xlu0 %v677, 32
        %v790 = vpop.permute.xlu0 %789
        %793 = vst.msk [vmem:[#allocation2 + $0x10] sm:$0xff] %vm726, %v788
        %794 = vst.msk [vmem:[#allocation2 + $0x30] sm:$0xff] %vm726, %v790
        %797 = vrot.lane.b32.xlu0 %v680, 64
        %v798 = vpop.permute.xlu0 %797
        %799 = vrot.lane.b32.xlu0 %v683, 64
        %v800 = vpop.permute.xlu0 %799
        %803 = vst.msk [vmem:[#allocation2 + $0x10] sm:$0xff] %vm737, %v798
        %804 = vst.msk [vmem:[#allocation2 + $0x30] sm:$0xff] %vm737, %v800
        %807 = vrot.lane.b32.xlu0 %v686, 96
        %v808 = vpop.permute.xlu0 %807
        %809 = vrot.lane.b32.xlu0 %v689, 96
        %v810 = vpop.permute.xlu0 %809
        %813 = vst.msk [vmem:[#allocation2 + $0x10] sm:$0xff] %vm748, %v808
        %814 = vst.msk [vmem:[#allocation2 + $0x30] sm:$0xff] %vm748, %v810
        %815 = vst.msk [vmem:[#allocation2 + $0x18] sm:$0xff] %vm715, %v692
        %816 = vst.msk [vmem:[#allocation2 + $0x38] sm:$0xff] %vm715, %v695
        %819 = vrot.lane.b32.xlu0 %v698, 32
        %v820 = vpop.permute.xlu0 %819
        %821 = vrot.lane.b32.xlu0 %v701, 32
        %v822 = vpop.permute.xlu0 %821
        %825 = vst.msk [vmem:[#allocation2 + $0x18] sm:$0xff] %vm726, %v820
        %826 = vst.msk [vmem:[#allocation2 + $0x38] sm:$0xff] %vm726, %v822
        %829 = vrot.lane.b32.xlu0 %v704, 64
        %v830 = vpop.permute.xlu0 %829
        %831 = vrot.lane.b32.xlu0 %v707, 64
        %v832 = vpop.permute.xlu0 %831
        %835 = vst.msk [vmem:[#allocation2 + $0x18] sm:$0xff] %vm737, %v830
        %836 = vst.msk [vmem:[#allocation2 + $0x38] sm:$0xff] %vm737, %v832
        %839 = vrot.lane.b32.xlu0 %v710, 96
        %v840 = vpop.permute.xlu0 %839
        %841 = vrot.lane.b32.xlu0 %v713, 96
        %v842 = vpop.permute.xlu0 %841
        %845 = vst.msk [vmem:[#allocation2 + $0x18] sm:$0xff] %vm748, %v840
        %846 = vst.msk [vmem:[#allocation2 + $0x38] sm:$0xff] %vm748, %v842
        %v847 = vld [vmem:[#allocation2] sm:$0xff]
        %v848 = vld [vmem:[#allocation2 + $0x8] sm:$0xff]
        %v849 = vld [vmem:[#allocation2 + $0x10] sm:$0xff]
        %v850 = vld [vmem:[#allocation2 + $0x18] sm:$0xff]
        %v851 = vld [vmem:[#allocation2 + $0x20] sm:$0xff]
        %v852 = vld [vmem:[#allocation2 + $0x28] sm:$0xff]
        %v853 = vld [vmem:[#allocation2 + $0x30] sm:$0xff]
        %v854 = vld [vmem:[#allocation2 + $0x38] sm:$0xff]
        %v855 = vld [vmem:[%s4] sm:$0xff]
        %v856 = vld [vmem:[%s4 + $0x8] sm:$0xff]
        %v857 = vld [vmem:[%s4 + $0x10] sm:$0xff]
        %v858 = vld [vmem:[%s4 + $0x18] sm:$0xff]
        %v859 = vld [vmem:[%s4 + $0x20] sm:$0xff]
        %v860 = vld [vmem:[%s4 + $0x28] sm:$0xff]
        %v861 = vld [vmem:[%s4 + $0x30] sm:$0xff]
        %v862 = vld [vmem:[%s4 + $0x38] sm:$0xff]
        %v863 = vld [vmem:[%s4 + $0x40] sm:$0xff]
        %v864 = vld [vmem:[%s4 + $0x48] sm:$0xff]
        %v865 = vld [vmem:[%s4 + $0x50] sm:$0xff]
        %v866 = vld [vmem:[%s4 + $0x58] sm:$0xff]
        %v867 = vld [vmem:[%s4 + $0x60] sm:$0xff]
        %v868 = vld [vmem:[%s4 + $0x68] sm:$0xff]
        %v869 = vld [vmem:[%s4 + $0x70] sm:$0xff]
        %v870 = vld [vmem:[%s4 + $0x78] sm:$0xff]
        %v871 = vld [vmem:[%s4 + $0x80] sm:$0xff]
        %v872 = vld [vmem:[%s4 + $0x88] sm:$0xff]
        %v873 = vld [vmem:[%s4 + $0x90] sm:$0xff]
        %v874 = vld [vmem:[%s4 + $0x98] sm:$0xff]
        %v875 = vld [vmem:[%s4 + $0xa0] sm:$0xff]
        %v876 = vld [vmem:[%s4 + $0xa8] sm:$0xff]
        %v877 = vld [vmem:[%s4 + $0xb0] sm:$0xff]
        %v878 = vld [vmem:[%s4 + $0xb8] sm:$0xff]
        %v879 = vld [vmem:[%s4 + $0xc0] sm:$0xff]
        %v880 = vld [vmem:[%s4 + $0xc8] sm:$0xff]
        %v881 = vld [vmem:[%s4 + $0xd0] sm:$0xff]
        %v882 = vld [vmem:[%s4 + $0xd8] sm:$0xff]
        %v883 = vld [vmem:[%s4 + $0xe0] sm:$0xff]
        %v884 = vld [vmem:[%s4 + $0xe8] sm:$0xff]
        %v885 = vld [vmem:[%s4 + $0xf0] sm:$0xff]
        %v886 = vld [vmem:[%s4 + $0xf8] sm:$0xff]
        %v887 = vld [vmem:[%s4 + $0x100] sm:$0xff]
        %v888 = vld [vmem:[%s4 + $0x108] sm:$0xff]
        %v889 = vld [vmem:[%s4 + $0x110] sm:$0xff]
        %v890 = vld [vmem:[%s4 + $0x118] sm:$0xff]
        %v891 = vld [vmem:[%s4 + $0x120] sm:$0xff]
        %v892 = vld [vmem:[%s4 + $0x128] sm:$0xff]
        %v893 = vld [vmem:[%s4 + $0x130] sm:$0xff]
        %v894 = vld [vmem:[%s4 + $0x138] sm:$0xff]
        %v895 = vld [vmem:[%s4 + $0x140] sm:$0xff]
        %v896 = vld [vmem:[%s4 + $0x148] sm:$0xff]
        %v897 = vld [vmem:[%s4 + $0x150] sm:$0xff]
        %v898 = vld [vmem:[%s4 + $0x158] sm:$0xff]
        %v899 = vld [vmem:[%s4 + $0x160] sm:$0xff]
        %v900 = vld [vmem:[%s4 + $0x168] sm:$0xff]
        %v901 = vld [vmem:[%s4 + $0x170] sm:$0xff]
        %v902 = vld [vmem:[%s4 + $0x178] sm:$0xff]
        %v903 = vld [vmem:[%s4 + $0x180] sm:$0xff]
        %v904 = vld [vmem:[%s4 + $0x188] sm:$0xff]
        %v905 = vld [vmem:[%s4 + $0x190] sm:$0xff]
        %v906 = vld [vmem:[%s4 + $0x198] sm:$0xff]
        %v907 = vld [vmem:[%s4 + $0x1a0] sm:$0xff]
        %v908 = vld [vmem:[%s4 + $0x1a8] sm:$0xff]
        %v909 = vld [vmem:[%s4 + $0x1b0] sm:$0xff]
        %v910 = vld [vmem:[%s4 + $0x1b8] sm:$0xff]
        %v911 = vld [vmem:[%s4 + $0x1c0] sm:$0xff]
        %v912 = vld [vmem:[%s4 + $0x1c8] sm:$0xff]
        %v913 = vld [vmem:[%s4 + $0x1d0] sm:$0xff]
        %v914 = vld [vmem:[%s4 + $0x1d8] sm:$0xff]
        %v915 = vld [vmem:[%s4 + $0x1e0] sm:$0xff]
        %v916 = vld [vmem:[%s4 + $0x1e8] sm:$0xff]
        %v917 = vld [vmem:[%s4 + $0x1f0] sm:$0xff]
        %v918 = vld [vmem:[%s4 + $0x1f8] sm:$0xff]
        %v919 = vld [vmem:[%s5] sm:$0x1]
        %v921 = vperm.slane %v919, 0
        %923 = vmatpush.msra.mxu0 %v870
        %924 = vmatpush.msra.mxu0 %v869
        %925 = vmatpush.msra.mxu0 %v868
        %926 = vmatpush.msra.mxu0 %v867
        %927 = vmatpush.msra.mxu0 %v866
        %928 = vmatpush.msra.mxu0 %v865
        %929 = vmatpush.msra.mxu0 %v864
        %930 = vmatpush.msra.mxu0 %v863
        %931 = vmatpush.msra.mxu0 %v862
        %932 = vmatpush.msra.mxu0 %v861
        %933 = vmatpush.msra.mxu0 %v860
        %934 = vmatpush.msra.mxu0 %v859
        %935 = vmatpush.msra.mxu0 %v858
        %936 = vmatpush.msra.mxu0 %v857
        %937 = vmatpush.msra.mxu0 %v856
        %938 = vmatpush.msra.mxu0 %v855
        %939 = vmatmul.f32.gmra.mxu0 %v847
        %v940 = vpop.f32.mrf.mxu0
        %v941 = vadd.f32 %v921, %v940
        %942 = vmatmul.f32.gmra.mxu0 %v851
        %v943 = vpop.f32.mrf.mxu0
        %v944 = vadd.f32 %v921, %v943
        %945 = vdwg.mxu0
        %946 = vmatpush.msra.mxu0 %v886
        %947 = vmatpush.msra.mxu0 %v885
        %948 = vmatpush.msra.mxu0 %v884
        %949 = vmatpush.msra.mxu0 %v883
        %950 = vmatpush.msra.mxu0 %v882
        %951 = vmatpush.msra.mxu0 %v881
        %952 = vmatpush.msra.mxu0 %v880
        %953 = vmatpush.msra.mxu0 %v879
        %954 = vmatpush.msra.mxu0 %v878
        %955 = vmatpush.msra.mxu0 %v877
        %956 = vmatpush.msra.mxu0 %v876
        %957 = vmatpush.msra.mxu0 %v875
        %958 = vmatpush.msra.mxu0 %v874
        %959 = vmatpush.msra.mxu0 %v873
        %960 = vmatpush.msra.mxu0 %v872
        %961 = vmatpush.msra.mxu0 %v871
        %962 = vmatmul.f32.gmra.mxu0 %v848
        %v963 = vpop.f32.mrf.mxu0
        %v964 = vadd.f32 %v941, %v963
        %965 = vmatmul.f32.gmra.mxu0 %v852
        %v966 = vpop.f32.mrf.mxu0
        %v967 = vadd.f32 %v944, %v966
        %968 = vdwg.mxu0
        %969 = vmatpush.msra.mxu0 %v902
        %970 = vmatpush.msra.mxu0 %v901
        %971 = vmatpush.msra.mxu0 %v900
        %972 = vmatpush.msra.mxu0 %v899
        %973 = vmatpush.msra.mxu0 %v898
        %974 = vmatpush.msra.mxu0 %v897
        %975 = vmatpush.msra.mxu0 %v896
        %976 = vmatpush.msra.mxu0 %v895
        %977 = vmatpush.msra.mxu0 %v894
        %978 = vmatpush.msra.mxu0 %v893
        %979 = vmatpush.msra.mxu0 %v892
        %980 = vmatpush.msra.mxu0 %v891
        %981 = vmatpush.msra.mxu0 %v890
        %982 = vmatpush.msra.mxu0 %v889
        %983 = vmatpush.msra.mxu0 %v888
        %984 = vmatpush.msra.mxu0 %v887
        %985 = vmatmul.f32.gmra.mxu0 %v849
        %v986 = vpop.f32.mrf.mxu0
        %v987 = vadd.f32 %v964, %v986
        %988 = vmatmul.f32.gmra.mxu0 %v853
        %v989 = vpop.f32.mrf.mxu0
        %v990 = vadd.f32 %v967, %v989
        %991 = vdwg.mxu0
        %992 = vmatpush.msra.mxu0 %v918
        %993 = vmatpush.msra.mxu0 %v917
        %994 = vmatpush.msra.mxu0 %v916
        %995 = vmatpush.msra.mxu0 %v915
        %996 = vmatpush.msra.mxu0 %v914
        %997 = vmatpush.msra.mxu0 %v913
        %998 = vmatpush.msra.mxu0 %v912
        %999 = vmatpush.msra.mxu0 %v911
        %1000 = vmatpush.msra.mxu0 %v910
        %1001 = vmatpush.msra.mxu0 %v909
        %1002 = vmatpush.msra.mxu0 %v908
        %1003 = vmatpush.msra.mxu0 %v907
        %1004 = vmatpush.msra.mxu0 %v906
        %1005 = vmatpush.msra.mxu0 %v905
        %1006 = vmatpush.msra.mxu0 %v904
        %1007 = vmatpush.msra.mxu0 %v903
        %1008 = vmatmul.f32.gmra.mxu0 %v850
        %v1009 = vpop.f32.mrf.mxu0
        %v1010 = vadd.f32 %v987, %v1009
        %1011 = vmatmul.f32.gmra.mxu0 %v854
        %v1012 = vpop.f32.mrf.mxu0
        %v1013 = vadd.f32 %v990, %v1012
        %1014 = vdwg.mxu0
        %v1015 = vmax.f32 %v1010, 0.0
        %v1016 = vmax.f32 %v1013, 0.0
        %v1017 = vld [vmem:[%s6] sm:$0xff]
        %v1018 = vld [vmem:[%s6 + $0x8] sm:$0xff]
        %v1019 = vld [vmem:[%s6 + $0x10] sm:$0xff]
        %v1020 = vld [vmem:[%s6 + $0x18] sm:$0xff]
        %v1021 = vld [vmem:[%s6 + $0x20] sm:$0xff]
        %v1022 = vld [vmem:[%s6 + $0x28] sm:$0xff]
        %v1023 = vld [vmem:[%s6 + $0x30] sm:$0xff]
        %v1024 = vld [vmem:[%s6 + $0x38] sm:$0xff]
        %v1025 = vld [vmem:[%s6 + $0x40] sm:$0xff]
        %v1026 = vld [vmem:[%s6 + $0x48] sm:$0xff]
        %v1027 = vld [vmem:[%s6 + $0x50] sm:$0xff]
        %v1028 = vld [vmem:[%s6 + $0x58] sm:$0xff]
        %v1029 = vld [vmem:[%s6 + $0x60] sm:$0xff]
        %v1030 = vld [vmem:[%s6 + $0x68] sm:$0xff]
        %v1031 = vld [vmem:[%s6 + $0x70] sm:$0xff]
        %v1032 = vld [vmem:[%s6 + $0x78] sm:$0xff]
        %v1033 = vld [vmem:[%s6 + $0x80] sm:$0xff]
        %v1034 = vld [vmem:[%s6 + $0x88] sm:$0xff]
        %v1036 = vsel %vm399, %v1017, 0
        %v1039 = vsel %vm399, %v1018, 0
        %v1042 = vsel %vm399, %v1019, 0
        %v1045 = vsel %vm399, %v1020, 0
        %v1048 = vsel %vm399, %v1021, 0
        %v1051 = vsel %vm399, %v1022, 0
        %v1054 = vsel %vm399, %v1023, 0
        %v1057 = vsel %vm399, %v1024, 0
        %v1060 = vsel %vm399, %v1025, 0
        %v1063 = vsel %vm399, %v1026, 0
        %v1066 = vsel %vm399, %v1027, 0
        %v1069 = vsel %vm399, %v1028, 0
        %v1072 = vsel %vm399, %v1029, 0
        %v1075 = vsel %vm399, %v1030, 0
        %v1078 = vsel %vm399, %v1031, 0
        %v1081 = vsel %vm399, %v1032, 0
        %v1084 = vsel %vm399, %v1033, 0
        %v1087 = vsel %vm399, %v1034, 0
        %1089 = vmatpush.msra.mxu0 0.0
        %1090 = vmatpush.msra.mxu0 0.0
        %1091 = vmatpush.msra.mxu0 0.0
        %1092 = vmatpush.msra.mxu0 0.0
        %1093 = vmatpush.msra.mxu0 0.0
        %1094 = vmatpush.msra.mxu0 0.0
        %1095 = vmatpush.msra.mxu0 0.0
        %1096 = vmatpush.msra.mxu0 0.0
        %1097 = vmatpush.msra.mxu0 0.0
        %1098 = vmatpush.msra.mxu0 0.0
        %1099 = vmatpush.msra.mxu0 0.0
        %1100 = vmatpush.msra.mxu0 0.0
        %1101 = vmatpush.msra.mxu0 0.0
        %1102 = vmatpush.msra.mxu0 0.0
        %1103 = vmatpush.msra.mxu0 %v1016
        %1104 = vmatpush.msra.mxu0 %v1015
        %1105 = vmatmul.f32.gmra.mxu0 %v1036
        %v1106 = vpop.f32.mrf.mxu0
        %v1107 = vadd.f32 0.0, %v1106
        %1108 = vmatmul.f32.gmra.mxu0 %v1039
        %v1109 = vpop.f32.mrf.mxu0
        %v1110 = vadd.f32 0.0, %v1109
        %1111 = vmatmul.f32.gmra.mxu0 %v1042
        %v1112 = vpop.f32.mrf.mxu0
        %v1113 = vadd.f32 0.0, %v1112
        %1114 = vmatmul.f32.gmra.mxu0 %v1045
        %v1115 = vpop.f32.mrf.mxu0
        %v1116 = vadd.f32 0.0, %v1115
        %1117 = vmatmul.f32.gmra.mxu0 %v1048
        %v1118 = vpop.f32.mrf.mxu0
        %v1119 = vadd.f32 0.0, %v1118
        %1120 = vmatmul.f32.gmra.mxu0 %v1051
        %v1121 = vpop.f32.mrf.mxu0
        %v1122 = vadd.f32 0.0, %v1121
        %1123 = vmatmul.f32.gmra.mxu0 %v1054
        %v1124 = vpop.f32.mrf.mxu0
        %v1125 = vadd.f32 0.0, %v1124
        %1126 = vmatmul.f32.gmra.mxu0 %v1057
        %v1127 = vpop.f32.mrf.mxu0
        %v1128 = vadd.f32 0.0, %v1127
        %1129 = vmatmul.f32.gmra.mxu0 %v1060
        %v1130 = vpop.f32.mrf.mxu0
        %v1131 = vadd.f32 0.0, %v1130
        %1132 = vmatmul.f32.gmra.mxu0 %v1063
        %v1133 = vpop.f32.mrf.mxu0
        %v1134 = vadd.f32 0.0, %v1133
        %1135 = vmatmul.f32.gmra.mxu0 %v1066
        %v1136 = vpop.f32.mrf.mxu0
        %v1137 = vadd.f32 0.0, %v1136
        %1138 = vmatmul.f32.gmra.mxu0 %v1069
        %v1139 = vpop.f32.mrf.mxu0
        %v1140 = vadd.f32 0.0, %v1139
        %1141 = vmatmul.f32.gmra.mxu0 %v1072
        %v1142 = vpop.f32.mrf.mxu0
        %v1143 = vadd.f32 0.0, %v1142
        %1144 = vmatmul.f32.gmra.mxu0 %v1075
        %v1145 = vpop.f32.mrf.mxu0
        %v1146 = vadd.f32 0.0, %v1145
        %1147 = vmatmul.f32.gmra.mxu0 %v1078
        %v1148 = vpop.f32.mrf.mxu0
        %v1149 = vadd.f32 0.0, %v1148
        %1150 = vmatmul.f32.gmra.mxu0 %v1081
        %v1151 = vpop.f32.mrf.mxu0
        %v1152 = vadd.f32 0.0, %v1151
        %1153 = vmatmul.f32.gmra.mxu0 %v1084
        %v1154 = vpop.f32.mrf.mxu0
        %v1155 = vadd.f32 0.0, %v1154
        %1156 = vmatmul.f32.gmra.mxu0 %v1087
        %v1157 = vpop.f32.mrf.mxu0
        %v1158 = vadd.f32 0.0, %v1157
        %1159 = vdwg.mxu0
        %1160 = vst.msk [vmem:[#allocation3] sm:$0xff] %vm505, %v1107
        %1161 = vst.msk [vmem:[#allocation3 + $0x28] sm:$0xff] %vm505, %v1110
        %1164 = vrot.lane.b32.xlu0 %v1113, 64
        %v1165 = vpop.permute.xlu0 %1164
        %1166 = vrot.lane.b32.xlu0 %v1116, 64
        %v1167 = vpop.permute.xlu0 %1166
        %vm1170 = vcmask 1048064
        %1171 = vst.msk [vmem:[#allocation3] sm:$0xff] %vm1170, %v1165
        %1172 = vst.msk [vmem:[#allocation3 + $0x28] sm:$0xff] %vm1170, %v1167
        %1173 = vst.msk [vmem:[#allocation3 + $0x8] sm:$0xff] %vm505, %v1119
        %1174 = vst.msk [vmem:[#allocation3 + $0x30] sm:$0xff] %vm505, %v1122
        %1177 = vrot.lane.b32.xlu0 %v1125, 64
        %v1178 = vpop.permute.xlu0 %1177
        %1179 = vrot.lane.b32.xlu0 %v1128, 64
        %v1180 = vpop.permute.xlu0 %1179
        %1183 = vst.msk [vmem:[#allocation3 + $0x8] sm:$0xff] %vm1170, %v1178
        %1184 = vst.msk [vmem:[#allocation3 + $0x30] sm:$0xff] %vm1170, %v1180
        %1185 = vst.msk [vmem:[#allocation3 + $0x10] sm:$0xff] %vm505, %v1131
        %1186 = vst.msk [vmem:[#allocation3 + $0x38] sm:$0xff] %vm505, %v1134
        %1189 = vrot.lane.b32.xlu0 %v1137, 64
        %v1190 = vpop.permute.xlu0 %1189
        %1191 = vrot.lane.b32.xlu0 %v1140, 64
        %v1192 = vpop.permute.xlu0 %1191
        %1195 = vst.msk [vmem:[#allocation3 + $0x10] sm:$0xff] %vm1170, %v1190
        %1196 = vst.msk [vmem:[#allocation3 + $0x38] sm:$0xff] %vm1170, %v1192
        %1197 = vst.msk [vmem:[#allocation3 + $0x18] sm:$0xff] %vm505, %v1143
        %1198 = vst.msk [vmem:[#allocation3 + $0x40] sm:$0xff] %vm505, %v1146
        %1201 = vrot.lane.b32.xlu0 %v1149, 64
        %v1202 = vpop.permute.xlu0 %1201
        %1203 = vrot.lane.b32.xlu0 %v1152, 64
        %v1204 = vpop.permute.xlu0 %1203
        %1207 = vst.msk [vmem:[#allocation3 + $0x18] sm:$0xff] %vm1170, %v1202
        %1208 = vst.msk [vmem:[#allocation3 + $0x40] sm:$0xff] %vm1170, %v1204
        %1209 = vst.msk [vmem:[#allocation3 + $0x20] sm:$0xff] %vm505, %v1155
        %1210 = vst.msk [vmem:[#allocation3 + $0x48] sm:$0xff] %vm505, %v1158
        %v1211 = vld [vmem:[#allocation3] sm:$0xff]
        %v1212 = vld [vmem:[#allocation3 + $0x8] sm:$0xff]
        %v1213 = vld [vmem:[#allocation3 + $0x10] sm:$0xff]
        %v1214 = vld [vmem:[#allocation3 + $0x18] sm:$0xff]
        %v1215 = vld [vmem:[#allocation3 + $0x20] sm:$0xff]
        %v1216 = vld [vmem:[#allocation3 + $0x28] sm:$0xff]
        %v1217 = vld [vmem:[#allocation3 + $0x30] sm:$0xff]
        %v1218 = vld [vmem:[#allocation3 + $0x38] sm:$0xff]
        %v1219 = vld [vmem:[#allocation3 + $0x40] sm:$0xff]
        %v1220 = vld [vmem:[#allocation3 + $0x48] sm:$0xff]
        %v1221 = vld [vmem:[%s7] sm:$0xff]
        %v1222 = vld [vmem:[%s7 + $0x8] sm:$0xff]
        %v1223 = vld [vmem:[%s7 + $0x10] sm:$0xff]
        %v1224 = vld [vmem:[%s7 + $0x18] sm:$0xff]
        %v1225 = vld [vmem:[%s7 + $0x20] sm:$0xff]
        %v1226 = vld [vmem:[%s7 + $0x28] sm:$0xff]
        %v1227 = vld [vmem:[%s7 + $0x30] sm:$0xff]
        %v1228 = vld [vmem:[%s7 + $0x38] sm:$0xff]
        %v1229 = vld [vmem:[%s7 + $0x40] sm:$0xff]
        %v1230 = vld [vmem:[%s7 + $0x48] sm:$0xff]
        %v1231 = vld [vmem:[%s7 + $0x50] sm:$0xff]
        %v1232 = vld [vmem:[%s7 + $0x58] sm:$0xff]
        %v1233 = vld [vmem:[%s7 + $0x60] sm:$0xff]
        %v1234 = vld [vmem:[%s7 + $0x68] sm:$0xff]
        %v1235 = vld [vmem:[%s7 + $0x70] sm:$0xff]
        %v1236 = vld [vmem:[%s7 + $0x78] sm:$0xff]
        %v1237 = vld [vmem:[%s7 + $0x80] sm:$0xff]
        %v1238 = vld [vmem:[%s7 + $0x88] sm:$0xff]
        %v1239 = vld [vmem:[%s7 + $0x90] sm:$0xff]
        %v1240 = vld [vmem:[%s7 + $0x98] sm:$0xff]
        %v1241 = vld [vmem:[%s7 + $0xa0] sm:$0xff]
        %v1242 = vld [vmem:[%s7 + $0xa8] sm:$0xff]
        %v1243 = vld [vmem:[%s7 + $0xb0] sm:$0xff]
        %v1244 = vld [vmem:[%s7 + $0xb8] sm:$0xff]
        %v1245 = vld [vmem:[%s7 + $0xc0] sm:$0xff]
        %v1246 = vld [vmem:[%s7 + $0xc8] sm:$0xff]
        %v1247 = vld [vmem:[%s7 + $0xd0] sm:$0xff]
        %v1248 = vld [vmem:[%s7 + $0xd8] sm:$0xff]
        %v1249 = vld [vmem:[%s7 + $0xe0] sm:$0xff]
        %v1250 = vld [vmem:[%s7 + $0xe8] sm:$0xff]
        %v1251 = vld [vmem:[%s7 + $0xf0] sm:$0xff]
        %v1252 = vld [vmem:[%s7 + $0xf8] sm:$0xff]
        %v1253 = vld [vmem:[%s7 + $0x100] sm:$0xff]
        %v1254 = vld [vmem:[%s7 + $0x108] sm:$0xff]
        %v1255 = vld [vmem:[%s7 + $0x110] sm:$0xff]
        %v1256 = vld [vmem:[%s7 + $0x118] sm:$0xff]
        %v1257 = vld [vmem:[%s7 + $0x120] sm:$0xff]
        %v1258 = vld [vmem:[%s7 + $0x128] sm:$0xff]
        %v1259 = vld [vmem:[%s7 + $0x130] sm:$0xff]
        %v1260 = vld [vmem:[%s7 + $0x138] sm:$0xff]
        %v1261 = vld [vmem:[%s7 + $0x140] sm:$0xff]
        %v1262 = vld [vmem:[%s7 + $0x148] sm:$0xff]
        %v1263 = vld [vmem:[%s7 + $0x150] sm:$0xff]
        %v1264 = vld [vmem:[%s7 + $0x158] sm:$0xff]
        %v1265 = vld [vmem:[%s7 + $0x160] sm:$0xff]
        %v1266 = vld [vmem:[%s7 + $0x168] sm:$0xff]
        %v1267 = vld [vmem:[%s7 + $0x170] sm:$0xff]
        %v1268 = vld [vmem:[%s7 + $0x178] sm:$0xff]
        %v1269 = vld [vmem:[%s7 + $0x180] sm:$0xff]
        %v1270 = vld [vmem:[%s7 + $0x188] sm:$0xff]
        %v1271 = vld [vmem:[%s7 + $0x190] sm:$0xff]
        %v1272 = vld [vmem:[%s7 + $0x198] sm:$0xff]
        %v1273 = vld [vmem:[%s7 + $0x1a0] sm:$0xff]
        %v1274 = vld [vmem:[%s7 + $0x1a8] sm:$0xff]
        %v1275 = vld [vmem:[%s7 + $0x1b0] sm:$0xff]
        %v1276 = vld [vmem:[%s7 + $0x1b8] sm:$0xff]
        %v1277 = vld [vmem:[%s7 + $0x1c0] sm:$0xff]
        %v1278 = vld [vmem:[%s7 + $0x1c8] sm:$0xff]
        %v1279 = vld [vmem:[%s7 + $0x1d0] sm:$0xff]
        %v1280 = vld [vmem:[%s7 + $0x1d8] sm:$0xff]
        %v1281 = vld [vmem:[%s7 + $0x1e0] sm:$0xff]
        %v1282 = vld [vmem:[%s7 + $0x1e8] sm:$0xff]
        %v1283 = vld [vmem:[%s7 + $0x1f0] sm:$0xff]
        %v1284 = vld [vmem:[%s7 + $0x1f8] sm:$0xff]
        %v1285 = vld [vmem:[%s7 + $0x200] sm:$0xff]
        %v1286 = vld [vmem:[%s7 + $0x208] sm:$0xff]
        %v1287 = vld [vmem:[%s7 + $0x210] sm:$0xff]
        %v1288 = vld [vmem:[%s7 + $0x218] sm:$0xff]
        %v1289 = vld [vmem:[%s7 + $0x220] sm:$0xff]
        %v1290 = vld [vmem:[%s7 + $0x228] sm:$0xff]
        %v1291 = vld [vmem:[%s7 + $0x230] sm:$0xff]
        %v1292 = vld [vmem:[%s7 + $0x238] sm:$0xff]
        %v1293 = vld [vmem:[%s8] sm:$0x1]
        %v1295 = vperm.slane %v1293, 0
        %v1298 = vsel %vm505, %v1215, 0
        %v1301 = vsel %vm505, %v1220, 0
        %1303 = vmatpush.msra.mxu0 %v1236
        %1304 = vmatpush.msra.mxu0 %v1235
        %1305 = vmatpush.msra.mxu0 %v1234
        %1306 = vmatpush.msra.mxu0 %v1233
        %1307 = vmatpush.msra.mxu0 %v1232
        %1308 = vmatpush.msra.mxu0 %v1231
        %1309 = vmatpush.msra.mxu0 %v1230
        %1310 = vmatpush.msra.mxu0 %v1229
        %1311 = vmatpush.msra.mxu0 %v1228
        %1312 = vmatpush.msra.mxu0 %v1227
        %1313 = vmatpush.msra.mxu0 %v1226
        %1314 = vmatpush.msra.mxu0 %v1225
        %1315 = vmatpush.msra.mxu0 %v1224
        %1316 = vmatpush.msra.mxu0 %v1223
        %1317 = vmatpush.msra.mxu0 %v1222
        %1318 = vmatpush.msra.mxu0 %v1221
        %1319 = vmatmul.f32.gmra.mxu0 %v1211
        %v1320 = vpop.f32.mrf.mxu0
        %v1321 = vadd.f32 %v1295, %v1320
        %1322 = vmatmul.f32.gmra.mxu0 %v1216
        %v1323 = vpop.f32.mrf.mxu0
        %v1324 = vadd.f32 %v1295, %v1323
        %1325 = vdwg.mxu0
        %1326 = vmatpush.msra.mxu0 %v1252
        %1327 = vmatpush.msra.mxu0 %v1251
        %1328 = vmatpush.msra.mxu0 %v1250
        %1329 = vmatpush.msra.mxu0 %v1249
        %1330 = vmatpush.msra.mxu0 %v1248
        %1331 = vmatpush.msra.mxu0 %v1247
        %1332 = vmatpush.msra.mxu0 %v1246
        %1333 = vmatpush.msra.mxu0 %v1245
        %1334 = vmatpush.msra.mxu0 %v1244
        %1335 = vmatpush.msra.mxu0 %v1243
        %1336 = vmatpush.msra.mxu0 %v1242
        %1337 = vmatpush.msra.mxu0 %v1241
        %1338 = vmatpush.msra.mxu0 %v1240
        %1339 = vmatpush.msra.mxu0 %v1239
        %1340 = vmatpush.msra.mxu0 %v1238
        %1341 = vmatpush.msra.mxu0 %v1237
        %1342 = vmatmul.f32.gmra.mxu0 %v1212
        %v1343 = vpop.f32.mrf.mxu0
        %v1344 = vadd.f32 %v1321, %v1343
        %1345 = vmatmul.f32.gmra.mxu0 %v1217
        %v1346 = vpop.f32.mrf.mxu0
        %v1347 = vadd.f32 %v1324, %v1346
        %1348 = vdwg.mxu0
        %1349 = vmatpush.msra.mxu0 %v1268
        %1350 = vmatpush.msra.mxu0 %v1267
        %1351 = vmatpush.msra.mxu0 %v1266
        %1352 = vmatpush.msra.mxu0 %v1265
        %1353 = vmatpush.msra.mxu0 %v1264
        %1354 = vmatpush.msra.mxu0 %v1263
        %1355 = vmatpush.msra.mxu0 %v1262
        %1356 = vmatpush.msra.mxu0 %v1261
        %1357 = vmatpush.msra.mxu0 %v1260
        %1358 = vmatpush.msra.mxu0 %v1259
        %1359 = vmatpush.msra.mxu0 %v1258
        %1360 = vmatpush.msra.mxu0 %v1257
        %1361 = vmatpush.msra.mxu0 %v1256
        %1362 = vmatpush.msra.mxu0 %v1255
        %1363 = vmatpush.msra.mxu0 %v1254
        %1364 = vmatpush.msra.mxu0 %v1253
        %1365 = vmatmul.f32.gmra.mxu0 %v1213
        %v1366 = vpop.f32.mrf.mxu0
        %v1367 = vadd.f32 %v1344, %v1366
        %1368 = vmatmul.f32.gmra.mxu0 %v1218
        %v1369 = vpop.f32.mrf.mxu0
        %v1370 = vadd.f32 %v1347, %v1369
        %1371 = vdwg.mxu0
        %1372 = vmatpush.msra.mxu0 %v1284
        %1373 = vmatpush.msra.mxu0 %v1283
        %1374 = vmatpush.msra.mxu0 %v1282
        %1375 = vmatpush.msra.mxu0 %v1281
        %1376 = vmatpush.msra.mxu0 %v1280
        %1377 = vmatpush.msra.mxu0 %v1279
        %1378 = vmatpush.msra.mxu0 %v1278
        %1379 = vmatpush.msra.mxu0 %v1277
        %1380 = vmatpush.msra.mxu0 %v1276
        %1381 = vmatpush.msra.mxu0 %v1275
        %1382 = vmatpush.msra.mxu0 %v1274
        %1383 = vmatpush.msra.mxu0 %v1273
        %1384 = vmatpush.msra.mxu0 %v1272
        %1385 = vmatpush.msra.mxu0 %v1271
        %1386 = vmatpush.msra.mxu0 %v1270
        %1387 = vmatpush.msra.mxu0 %v1269
        %1388 = vmatmul.f32.gmra.mxu0 %v1214
        %v1389 = vpop.f32.mrf.mxu0
        %v1390 = vadd.f32 %v1367, %v1389
        %1391 = vmatmul.f32.gmra.mxu0 %v1219
        %v1392 = vpop.f32.mrf.mxu0
        %v1393 = vadd.f32 %v1370, %v1392
        %1394 = vdwg.mxu0
        %1395 = vmatpush.msra.mxu0 0.0
        %1396 = vmatpush.msra.mxu0 0.0
        %1397 = vmatpush.msra.mxu0 0.0
        %1398 = vmatpush.msra.mxu0 0.0
        %1399 = vmatpush.msra.mxu0 0.0
        %1400 = vmatpush.msra.mxu0 0.0
        %1401 = vmatpush.msra.mxu0 0.0
        %1402 = vmatpush.msra.mxu0 0.0
        %1403 = vmatpush.msra.mxu0 %v1292
        %1404 = vmatpush.msra.mxu0 %v1291
        %1405 = vmatpush.msra.mxu0 %v1290
        %1406 = vmatpush.msra.mxu0 %v1289
        %1407 = vmatpush.msra.mxu0 %v1288
        %1408 = vmatpush.msra.mxu0 %v1287
        %1409 = vmatpush.msra.mxu0 %v1286
        %1410 = vmatpush.msra.mxu0 %v1285
        %1411 = vmatmul.f32.gmra.mxu0 %v1298
        %v1412 = vpop.f32.mrf.mxu0
        %v1413 = vadd.f32 %v1390, %v1412
        %1414 = vmatmul.f32.gmra.mxu0 %v1301
        %v1415 = vpop.f32.mrf.mxu0
        %v1416 = vadd.f32 %v1393, %v1415
        %1417 = vdwg.mxu0
        %v1418 = vmax.f32 %v1413, 0.0
        %v1419 = vmax.f32 %v1416, 0.0
        %v1420 = vld [vmem:[%s6] sm:$0xff]
        %v1421 = vld [vmem:[%s6 + $0x8] sm:$0xff]
        %v1422 = vld [vmem:[%s6 + $0x10] sm:$0xff]
        %v1423 = vld [vmem:[%s6 + $0x18] sm:$0xff]
        %v1424 = vld [vmem:[%s6 + $0x20] sm:$0xff]
        %v1425 = vld [vmem:[%s6 + $0x28] sm:$0xff]
        %v1426 = vld [vmem:[%s6 + $0x30] sm:$0xff]
        %v1427 = vld [vmem:[%s6 + $0x38] sm:$0xff]
        %v1428 = vld [vmem:[%s6 + $0x40] sm:$0xff]
        %v1429 = vld [vmem:[%s6 + $0x48] sm:$0xff]
        %v1430 = vld [vmem:[%s6 + $0x50] sm:$0xff]
        %v1431 = vld [vmem:[%s6 + $0x58] sm:$0xff]
        %v1432 = vld [vmem:[%s6 + $0x60] sm:$0xff]
        %v1433 = vld [vmem:[%s6 + $0x68] sm:$0xff]
        %v1434 = vld [vmem:[%s6 + $0x70] sm:$0xff]
        %v1435 = vld [vmem:[%s6 + $0x78] sm:$0xff]
        %v1436 = vld [vmem:[%s6 + $0x80] sm:$0xff]
        %v1437 = vld [vmem:[%s6 + $0x88] sm:$0xff]
        %v1439 = vsel %vm399, %v1420, 0
        %v1442 = vsel %vm399, %v1421, 0
        %v1445 = vsel %vm399, %v1422, 0
        %v1448 = vsel %vm399, %v1423, 0
        %v1451 = vsel %vm399, %v1424, 0
        %v1454 = vsel %vm399, %v1425, 0
        %v1457 = vsel %vm399, %v1426, 0
        %v1460 = vsel %vm399, %v1427, 0
        %v1463 = vsel %vm399, %v1428, 0
        %v1466 = vsel %vm399, %v1429, 0
        %v1469 = vsel %vm399, %v1430, 0
        %v1472 = vsel %vm399, %v1431, 0
        %v1475 = vsel %vm399, %v1432, 0
        %v1478 = vsel %vm399, %v1433, 0
        %v1481 = vsel %vm399, %v1434, 0
        %v1484 = vsel %vm399, %v1435, 0
        %v1487 = vsel %vm399, %v1436, 0
        %v1490 = vsel %vm399, %v1437, 0
        %1492 = vmatpush.msra.mxu0 0.0
        %1493 = vmatpush.msra.mxu0 0.0
        %1494 = vmatpush.msra.mxu0 0.0
        %1495 = vmatpush.msra.mxu0 0.0
        %1496 = vmatpush.msra.mxu0 0.0
        %1497 = vmatpush.msra.mxu0 0.0
        %1498 = vmatpush.msra.mxu0 0.0
        %1499 = vmatpush.msra.mxu0 0.0
        %1500 = vmatpush.msra.mxu0 0.0
        %1501 = vmatpush.msra.mxu0 0.0
        %1502 = vmatpush.msra.mxu0 0.0
        %1503 = vmatpush.msra.mxu0 0.0
        %1504 = vmatpush.msra.mxu0 0.0
        %1505 = vmatpush.msra.mxu0 0.0
        %1506 = vmatpush.msra.mxu0 %v1419
        %1507 = vmatpush.msra.mxu0 %v1418
        %1508 = vmatmul.f32.gmra.mxu0 %v1439
        %v1509 = vpop.f32.mrf.mxu0
        %v1510 = vadd.f32 0.0, %v1509
        %1511 = vmatmul.f32.gmra.mxu0 %v1442
        %v1512 = vpop.f32.mrf.mxu0
        %v1513 = vadd.f32 0.0, %v1512
        %1514 = vmatmul.f32.gmra.mxu0 %v1445
        %v1515 = vpop.f32.mrf.mxu0
        %v1516 = vadd.f32 0.0, %v1515
        %1517 = vmatmul.f32.gmra.mxu0 %v1448
        %v1518 = vpop.f32.mrf.mxu0
        %v1519 = vadd.f32 0.0, %v1518
        %1520 = vmatmul.f32.gmra.mxu0 %v1451
        %v1521 = vpop.f32.mrf.mxu0
        %v1522 = vadd.f32 0.0, %v1521
        %1523 = vmatmul.f32.gmra.mxu0 %v1454
        %v1524 = vpop.f32.mrf.mxu0
        %v1525 = vadd.f32 0.0, %v1524
        %1526 = vmatmul.f32.gmra.mxu0 %v1457
        %v1527 = vpop.f32.mrf.mxu0
        %v1528 = vadd.f32 0.0, %v1527
        %1529 = vmatmul.f32.gmra.mxu0 %v1460
        %v1530 = vpop.f32.mrf.mxu0
        %v1531 = vadd.f32 0.0, %v1530
        %1532 = vmatmul.f32.gmra.mxu0 %v1463
        %v1533 = vpop.f32.mrf.mxu0
        %v1534 = vadd.f32 0.0, %v1533
        %1535 = vmatmul.f32.gmra.mxu0 %v1466
        %v1536 = vpop.f32.mrf.mxu0
        %v1537 = vadd.f32 0.0, %v1536
        %1538 = vmatmul.f32.gmra.mxu0 %v1469
        %v1539 = vpop.f32.mrf.mxu0
        %v1540 = vadd.f32 0.0, %v1539
        %1541 = vmatmul.f32.gmra.mxu0 %v1472
        %v1542 = vpop.f32.mrf.mxu0
        %v1543 = vadd.f32 0.0, %v1542
        %1544 = vmatmul.f32.gmra.mxu0 %v1475
        %v1545 = vpop.f32.mrf.mxu0
        %v1546 = vadd.f32 0.0, %v1545
        %1547 = vmatmul.f32.gmra.mxu0 %v1478
        %v1548 = vpop.f32.mrf.mxu0
        %v1549 = vadd.f32 0.0, %v1548
        %1550 = vmatmul.f32.gmra.mxu0 %v1481
        %v1551 = vpop.f32.mrf.mxu0
        %v1552 = vadd.f32 0.0, %v1551
        %1553 = vmatmul.f32.gmra.mxu0 %v1484
        %v1554 = vpop.f32.mrf.mxu0
        %v1555 = vadd.f32 0.0, %v1554
        %1556 = vmatmul.f32.gmra.mxu0 %v1487
        %v1557 = vpop.f32.mrf.mxu0
        %v1558 = vadd.f32 0.0, %v1557
        %1559 = vmatmul.f32.gmra.mxu0 %v1490
        %v1560 = vpop.f32.mrf.mxu0
        %v1561 = vadd.f32 0.0, %v1560
        %1562 = vdwg.mxu0
        %1563 = vst.msk [vmem:[#allocation4] sm:$0xff] %vm505, %v1510
        %1564 = vst.msk [vmem:[#allocation4 + $0x28] sm:$0xff] %vm505, %v1513
        %1567 = vrot.lane.b32.xlu0 %v1516, 64
        %v1568 = vpop.permute.xlu0 %1567
        %1569 = vrot.lane.b32.xlu0 %v1519, 64
        %v1570 = vpop.permute.xlu0 %1569
        %1573 = vst.msk [vmem:[#allocation4] sm:$0xff] %vm1170, %v1568
        %1574 = vst.msk [vmem:[#allocation4 + $0x28] sm:$0xff] %vm1170, %v1570
        %1575 = vst.msk [vmem:[#allocation4 + $0x8] sm:$0xff] %vm505, %v1522
        %1576 = vst.msk [vmem:[#allocation4 + $0x30] sm:$0xff] %vm505, %v1525
        %1579 = vrot.lane.b32.xlu0 %v1528, 64
        %v1580 = vpop.permute.xlu0 %1579
        %1581 = vrot.lane.b32.xlu0 %v1531, 64
        %v1582 = vpop.permute.xlu0 %1581
        %1585 = vst.msk [vmem:[#allocation4 + $0x8] sm:$0xff] %vm1170, %v1580
        %1586 = vst.msk [vmem:[#allocation4 + $0x30] sm:$0xff] %vm1170, %v1582
        %1587 = vst.msk [vmem:[#allocation4 + $0x10] sm:$0xff] %vm505, %v1534
        %1588 = vst.msk [vmem:[#allocation4 + $0x38] sm:$0xff] %vm505, %v1537
        %1591 = vrot.lane.b32.xlu0 %v1540, 64
        %v1592 = vpop.permute.xlu0 %1591
        %1593 = vrot.lane.b32.xlu0 %v1543, 64
        %v1594 = vpop.permute.xlu0 %1593
        %1597 = vst.msk [vmem:[#allocation4 + $0x10] sm:$0xff] %vm1170, %v1592
        %1598 = vst.msk [vmem:[#allocation4 + $0x38] sm:$0xff] %vm1170, %v1594
        %1599 = vst.msk [vmem:[#allocation4 + $0x18] sm:$0xff] %vm505, %v1546
        %1600 = vst.msk [vmem:[#allocation4 + $0x40] sm:$0xff] %vm505, %v1549
        %1603 = vrot.lane.b32.xlu0 %v1552, 64
        %v1604 = vpop.permute.xlu0 %1603
        %1605 = vrot.lane.b32.xlu0 %v1555, 64
        %v1606 = vpop.permute.xlu0 %1605
        %1609 = vst.msk [vmem:[#allocation4 + $0x18] sm:$0xff] %vm1170, %v1604
        %1610 = vst.msk [vmem:[#allocation4 + $0x40] sm:$0xff] %vm1170, %v1606
        %1611 = vst.msk [vmem:[#allocation4 + $0x20] sm:$0xff] %vm505, %v1558
        %1612 = vst.msk [vmem:[#allocation4 + $0x48] sm:$0xff] %vm505, %v1561
        %v1613 = vld [vmem:[#allocation4] sm:$0xff]
        %v1614 = vld [vmem:[#allocation4 + $0x8] sm:$0xff]
        %v1615 = vld [vmem:[#allocation4 + $0x10] sm:$0xff]
        %v1616 = vld [vmem:[#allocation4 + $0x18] sm:$0xff]
        %v1617 = vld [vmem:[#allocation4 + $0x20] sm:$0xff]
        %v1618 = vld [vmem:[#allocation4 + $0x28] sm:$0xff]
        %v1619 = vld [vmem:[#allocation4 + $0x30] sm:$0xff]
        %v1620 = vld [vmem:[#allocation4 + $0x38] sm:$0xff]
        %v1621 = vld [vmem:[#allocation4 + $0x40] sm:$0xff]
        %v1622 = vld [vmem:[#allocation4 + $0x48] sm:$0xff]
        %v1623 = vld [vmem:[%s9] sm:$0xff]
        %v1624 = vld [vmem:[%s9 + $0x8] sm:$0xff]
        %v1625 = vld [vmem:[%s9 + $0x10] sm:$0xff]
        %v1626 = vld [vmem:[%s9 + $0x18] sm:$0xff]
        %v1627 = vld [vmem:[%s9 + $0x20] sm:$0xff]
        %v1628 = vld [vmem:[%s9 + $0x28] sm:$0xff]
        %v1629 = vld [vmem:[%s9 + $0x30] sm:$0xff]
        %v1630 = vld [vmem:[%s9 + $0x38] sm:$0xff]
        %v1631 = vld [vmem:[%s9 + $0x40] sm:$0xff]
        %v1632 = vld [vmem:[%s9 + $0x48] sm:$0xff]
        %v1633 = vld [vmem:[%s9 + $0x50] sm:$0xff]
        %v1634 = vld [vmem:[%s9 + $0x58] sm:$0xff]
        %v1635 = vld [vmem:[%s9 + $0x60] sm:$0xff]
        %v1636 = vld [vmem:[%s9 + $0x68] sm:$0xff]
        %v1637 = vld [vmem:[%s9 + $0x70] sm:$0xff]
        %v1638 = vld [vmem:[%s9 + $0x78] sm:$0xff]
        %v1639 = vld [vmem:[%s9 + $0x80] sm:$0xff]
        %v1640 = vld [vmem:[%s9 + $0x88] sm:$0xff]
        %v1641 = vld [vmem:[%s9 + $0x90] sm:$0xff]
        %v1642 = vld [vmem:[%s9 + $0x98] sm:$0xff]
        %v1643 = vld [vmem:[%s9 + $0xa0] sm:$0xff]
        %v1644 = vld [vmem:[%s9 + $0xa8] sm:$0xff]
        %v1645 = vld [vmem:[%s9 + $0xb0] sm:$0xff]
        %v1646 = vld [vmem:[%s9 + $0xb8] sm:$0xff]
        %v1647 = vld [vmem:[%s9 + $0xc0] sm:$0xff]
        %v1648 = vld [vmem:[%s9 + $0xc8] sm:$0xff]
        %v1649 = vld [vmem:[%s9 + $0xd0] sm:$0xff]
        %v1650 = vld [vmem:[%s9 + $0xd8] sm:$0xff]
        %v1651 = vld [vmem:[%s9 + $0xe0] sm:$0xff]
        %v1652 = vld [vmem:[%s9 + $0xe8] sm:$0xff]
        %v1653 = vld [vmem:[%s9 + $0xf0] sm:$0xff]
        %v1654 = vld [vmem:[%s9 + $0xf8] sm:$0xff]
        %v1655 = vld [vmem:[%s9 + $0x100] sm:$0xff]
        %v1656 = vld [vmem:[%s9 + $0x108] sm:$0xff]
        %v1657 = vld [vmem:[%s9 + $0x110] sm:$0xff]
        %v1658 = vld [vmem:[%s9 + $0x118] sm:$0xff]
        %v1659 = vld [vmem:[%s9 + $0x120] sm:$0xff]
        %v1660 = vld [vmem:[%s9 + $0x128] sm:$0xff]
        %v1661 = vld [vmem:[%s9 + $0x130] sm:$0xff]
        %v1662 = vld [vmem:[%s9 + $0x138] sm:$0xff]
        %v1663 = vld [vmem:[%s9 + $0x140] sm:$0xff]
        %v1664 = vld [vmem:[%s9 + $0x148] sm:$0xff]
        %v1665 = vld [vmem:[%s9 + $0x150] sm:$0xff]
        %v1666 = vld [vmem:[%s9 + $0x158] sm:$0xff]
        %v1667 = vld [vmem:[%s9 + $0x160] sm:$0xff]
        %v1668 = vld [vmem:[%s9 + $0x168] sm:$0xff]
        %v1669 = vld [vmem:[%s9 + $0x170] sm:$0xff]
        %v1670 = vld [vmem:[%s9 + $0x178] sm:$0xff]
        %v1671 = vld [vmem:[%s9 + $0x180] sm:$0xff]
        %v1672 = vld [vmem:[%s9 + $0x188] sm:$0xff]
        %v1673 = vld [vmem:[%s9 + $0x190] sm:$0xff]
        %v1674 = vld [vmem:[%s9 + $0x198] sm:$0xff]
        %v1675 = vld [vmem:[%s9 + $0x1a0] sm:$0xff]
        %v1676 = vld [vmem:[%s9 + $0x1a8] sm:$0xff]
        %v1677 = vld [vmem:[%s9 + $0x1b0] sm:$0xff]
        %v1678 = vld [vmem:[%s9 + $0x1b8] sm:$0xff]
        %v1679 = vld [vmem:[%s9 + $0x1c0] sm:$0xff]
        %v1680 = vld [vmem:[%s9 + $0x1c8] sm:$0xff]
        %v1681 = vld [vmem:[%s9 + $0x1d0] sm:$0xff]
        %v1682 = vld [vmem:[%s9 + $0x1d8] sm:$0xff]
        %v1683 = vld [vmem:[%s9 + $0x1e0] sm:$0xff]
        %v1684 = vld [vmem:[%s9 + $0x1e8] sm:$0xff]
        %v1685 = vld [vmem:[%s9 + $0x1f0] sm:$0xff]
        %v1686 = vld [vmem:[%s9 + $0x1f8] sm:$0xff]
        %v1687 = vld [vmem:[%s9 + $0x200] sm:$0xff]
        %v1688 = vld [vmem:[%s9 + $0x208] sm:$0xff]
        %v1689 = vld [vmem:[%s9 + $0x210] sm:$0xff]
        %v1690 = vld [vmem:[%s9 + $0x218] sm:$0xff]
        %v1691 = vld [vmem:[%s9 + $0x220] sm:$0xff]
        %v1692 = vld [vmem:[%s9 + $0x228] sm:$0xff]
        %v1693 = vld [vmem:[%s9 + $0x230] sm:$0xff]
        %v1694 = vld [vmem:[%s9 + $0x238] sm:$0xff]
        %v1696 = vsel %vm505, %v1617, 0
        %v1699 = vsel %vm505, %v1622, 0
        %1701 = vmatpush.msra.mxu0 %v1638
        %1702 = vmatpush.msra.mxu0 %v1637
        %1703 = vmatpush.msra.mxu0 %v1636
        %1704 = vmatpush.msra.mxu0 %v1635
        %1705 = vmatpush.msra.mxu0 %v1634
        %1706 = vmatpush.msra.mxu0 %v1633
        %1707 = vmatpush.msra.mxu0 %v1632
        %1708 = vmatpush.msra.mxu0 %v1631
        %1709 = vmatpush.msra.mxu0 %v1630
        %1710 = vmatpush.msra.mxu0 %v1629
        %1711 = vmatpush.msra.mxu0 %v1628
        %1712 = vmatpush.msra.mxu0 %v1627
        %1713 = vmatpush.msra.mxu0 %v1626
        %1714 = vmatpush.msra.mxu0 %v1625
        %1715 = vmatpush.msra.mxu0 %v1624
        %1716 = vmatpush.msra.mxu0 %v1623
        %1717 = vmatmul.f32.gmra.mxu0 %v1613
        %v1718 = vpop.f32.mrf.mxu0
        %v1719 = vadd.f32 0.0, %v1718
        %1720 = vmatmul.f32.gmra.mxu0 %v1618
        %v1721 = vpop.f32.mrf.mxu0
        %v1722 = vadd.f32 0.0, %v1721
        %1723 = vdwg.mxu0
        %1724 = vmatpush.msra.mxu0 %v1654
        %1725 = vmatpush.msra.mxu0 %v1653
        %1726 = vmatpush.msra.mxu0 %v1652
        %1727 = vmatpush.msra.mxu0 %v1651
        %1728 = vmatpush.msra.mxu0 %v1650
        %1729 = vmatpush.msra.mxu0 %v1649
        %1730 = vmatpush.msra.mxu0 %v1648
        %1731 = vmatpush.msra.mxu0 %v1647
        %1732 = vmatpush.msra.mxu0 %v1646
        %1733 = vmatpush.msra.mxu0 %v1645
        %1734 = vmatpush.msra.mxu0 %v1644
        %1735 = vmatpush.msra.mxu0 %v1643
        %1736 = vmatpush.msra.mxu0 %v1642
        %1737 = vmatpush.msra.mxu0 %v1641
        %1738 = vmatpush.msra.mxu0 %v1640
        %1739 = vmatpush.msra.mxu0 %v1639
        %1740 = vmatmul.f32.gmra.mxu0 %v1614
        %v1741 = vpop.f32.mrf.mxu0
        %v1742 = vadd.f32 %v1719, %v1741
        %1743 = vmatmul.f32.gmra.mxu0 %v1619
        %v1744 = vpop.f32.mrf.mxu0
        %v1745 = vadd.f32 %v1722, %v1744
        %1746 = vdwg.mxu0
        %1747 = vmatpush.msra.mxu0 %v1670
        %1748 = vmatpush.msra.mxu0 %v1669
        %1749 = vmatpush.msra.mxu0 %v1668
        %1750 = vmatpush.msra.mxu0 %v1667
        %1751 = vmatpush.msra.mxu0 %v1666
        %1752 = vmatpush.msra.mxu0 %v1665
        %1753 = vmatpush.msra.mxu0 %v1664
        %1754 = vmatpush.msra.mxu0 %v1663
        %1755 = vmatpush.msra.mxu0 %v1662
        %1756 = vmatpush.msra.mxu0 %v1661
        %1757 = vmatpush.msra.mxu0 %v1660
        %1758 = vmatpush.msra.mxu0 %v1659
        %1759 = vmatpush.msra.mxu0 %v1658
        %1760 = vmatpush.msra.mxu0 %v1657
        %1761 = vmatpush.msra.mxu0 %v1656
        %1762 = vmatpush.msra.mxu0 %v1655
        %1763 = vmatmul.f32.gmra.mxu0 %v1615
        %v1764 = vpop.f32.mrf.mxu0
        %v1765 = vadd.f32 %v1742, %v1764
        %1766 = vmatmul.f32.gmra.mxu0 %v1620
        %v1767 = vpop.f32.mrf.mxu0
        %v1768 = vadd.f32 %v1745, %v1767
        %1769 = vdwg.mxu0
        %1770 = vmatpush.msra.mxu0 %v1686
        %1771 = vmatpush.msra.mxu0 %v1685
        %1772 = vmatpush.msra.mxu0 %v1684
        %1773 = vmatpush.msra.mxu0 %v1683
        %1774 = vmatpush.msra.mxu0 %v1682
        %1775 = vmatpush.msra.mxu0 %v1681
        %1776 = vmatpush.msra.mxu0 %v1680
        %1777 = vmatpush.msra.mxu0 %v1679
        %1778 = vmatpush.msra.mxu0 %v1678
        %1779 = vmatpush.msra.mxu0 %v1677
        %1780 = vmatpush.msra.mxu0 %v1676
        %1781 = vmatpush.msra.mxu0 %v1675
        %1782 = vmatpush.msra.mxu0 %v1674
        %1783 = vmatpush.msra.mxu0 %v1673
        %1784 = vmatpush.msra.mxu0 %v1672
        %1785 = vmatpush.msra.mxu0 %v1671
        %1786 = vmatmul.f32.gmra.mxu0 %v1616
        %v1787 = vpop.f32.mrf.mxu0
        %v1788 = vadd.f32 %v1765, %v1787
        %1789 = vmatmul.f32.gmra.mxu0 %v1621
        %v1790 = vpop.f32.mrf.mxu0
        %v1791 = vadd.f32 %v1768, %v1790
        %1792 = vdwg.mxu0
        %1793 = vmatpush.msra.mxu0 0.0
        %1794 = vmatpush.msra.mxu0 0.0
        %1795 = vmatpush.msra.mxu0 0.0
        %1796 = vmatpush.msra.mxu0 0.0
        %1797 = vmatpush.msra.mxu0 0.0
        %1798 = vmatpush.msra.mxu0 0.0
        %1799 = vmatpush.msra.mxu0 0.0
        %1800 = vmatpush.msra.mxu0 0.0
        %1801 = vmatpush.msra.mxu0 %v1694
        %1802 = vmatpush.msra.mxu0 %v1693
        %1803 = vmatpush.msra.mxu0 %v1692
        %1804 = vmatpush.msra.mxu0 %v1691
        %1805 = vmatpush.msra.mxu0 %v1690
        %1806 = vmatpush.msra.mxu0 %v1689
        %1807 = vmatpush.msra.mxu0 %v1688
        %1808 = vmatpush.msra.mxu0 %v1687
        %1809 = vmatmul.f32.gmra.mxu0 %v1696
        %v1810 = vpop.f32.mrf.mxu0
        %v1811 = vadd.f32 %v1788, %v1810
        %1812 = vmatmul.f32.gmra.mxu0 %v1699
        %v1813 = vpop.f32.mrf.mxu0
        %v1814 = vadd.f32 %v1791, %v1813
        %1815 = vdwg.mxu0
        %v1816 = vmax.f32 %v1811, 0.0
        %v1817 = vmax.f32 %v1814, 0.0
        %v1818 = vld [vmem:[%s10] sm:$0xff]
        %v1819 = vld [vmem:[%s10 + $0x8] sm:$0xff]
        %v1820 = vld [vmem:[%s10 + $0x10] sm:$0xff]
        %v1821 = vld [vmem:[%s10 + $0x18] sm:$0xff]
        %v1822 = vld [vmem:[%s10 + $0x20] sm:$0xff]
        %v1823 = vld [vmem:[%s10 + $0x28] sm:$0xff]
        %v1824 = vld [vmem:[%s10 + $0x30] sm:$0xff]
        %v1825 = vld [vmem:[%s10 + $0x38] sm:$0xff]
        %v1827 = vsel %vm505, %v1816, 0
        %v1830 = vsel %vm505, %v1817, 0
        %1832 = vmatpush.msra.mxu0 0.0
        %1833 = vmatpush.msra.mxu0 0.0
        %1834 = vmatpush.msra.mxu0 0.0
        %1835 = vmatpush.msra.mxu0 0.0
        %1836 = vmatpush.msra.mxu0 0.0
        %1837 = vmatpush.msra.mxu0 0.0
        %1838 = vmatpush.msra.mxu0 0.0
        %1839 = vmatpush.msra.mxu0 0.0
        %1840 = vmatpush.msra.mxu0 %v1825
        %1841 = vmatpush.msra.mxu0 %v1824
        %1842 = vmatpush.msra.mxu0 %v1823
        %1843 = vmatpush.msra.mxu0 %v1822
        %1844 = vmatpush.msra.mxu0 %v1821
        %1845 = vmatpush.msra.mxu0 %v1820
        %1846 = vmatpush.msra.mxu0 %v1819
        %1847 = vmatpush.msra.mxu0 %v1818
        %1848 = vmatmul.f32.gmra.mxu0 %v1827
        %v1849 = vpop.f32.mrf.mxu0
        %v1850 = vadd.f32 0.0, %v1849
        %1851 = vmatmul.f32.gmra.mxu0 %v1830
        %v1852 = vpop.f32.mrf.mxu0
        %v1853 = vadd.f32 0.0, %v1852
        %1854 = vdwg.mxu0
        %v1855 = vadd.f32 %v1413, %v1850
        %v1856 = vadd.f32 %v1416, %v1853
        %v1857 = vmax.f32 %v1855, 0.0
        %v1858 = vmax.f32 %v1856, 0.0
        %v1859 = vld [vmem:[%s6] sm:$0xff]
        %v1860 = vld [vmem:[%s6 + $0x8] sm:$0xff]
        %v1861 = vld [vmem:[%s6 + $0x10] sm:$0xff]
        %v1862 = vld [vmem:[%s6 + $0x18] sm:$0xff]
        %v1863 = vld [vmem:[%s6 + $0x20] sm:$0xff]
        %v1864 = vld [vmem:[%s6 + $0x28] sm:$0xff]
        %v1865 = vld [vmem:[%s6 + $0x30] sm:$0xff]
        %v1866 = vld [vmem:[%s6 + $0x38] sm:$0xff]
        %v1867 = vld [vmem:[%s6 + $0x40] sm:$0xff]
        %v1868 = vld [vmem:[%s6 + $0x48] sm:$0xff]
        %v1869 = vld [vmem:[%s6 + $0x50] sm:$0xff]
        %v1870 = vld [vmem:[%s6 + $0x58] sm:$0xff]
        %v1871 = vld [vmem:[%s6 + $0x60] sm:$0xff]
        %v1872 = vld [vmem:[%s6 + $0x68] sm:$0xff]
        %v1873 = vld [vmem:[%s6 + $0x70] sm:$0xff]
        %v1874 = vld [vmem:[%s6 + $0x78] sm:$0xff]
        %v1875 = vld [vmem:[%s6 + $0x80] sm:$0xff]
        %v1876 = vld [vmem:[%s6 + $0x88] sm:$0xff]
        %v1878 = vsel %vm399, %v1859, 0
        %v1881 = vsel %vm399, %v1860, 0
        %v1884 = vsel %vm399, %v1861, 0
        %v1887 = vsel %vm399, %v1862, 0
        %v1890 = vsel %vm399, %v1863, 0
        %v1893 = vsel %vm399, %v1864, 0
        %v1896 = vsel %vm399, %v1865, 0
        %v1899 = vsel %vm399, %v1866, 0
        %v1902 = vsel %vm399, %v1867, 0
        %v1905 = vsel %vm399, %v1868, 0
        %v1908 = vsel %vm399, %v1869, 0
        %v1911 = vsel %vm399, %v1870, 0
        %v1914 = vsel %vm399, %v1871, 0
        %v1917 = vsel %vm399, %v1872, 0
        %v1920 = vsel %vm399, %v1873, 0
        %v1923 = vsel %vm399, %v1874, 0
        %v1926 = vsel %vm399, %v1875, 0
        %v1929 = vsel %vm399, %v1876, 0
        %1931 = vmatpush.msra.mxu0 0.0
        %1932 = vmatpush.msra.mxu0 0.0
        %1933 = vmatpush.msra.mxu0 0.0
        %1934 = vmatpush.msra.mxu0 0.0
        %1935 = vmatpush.msra.mxu0 0.0
        %1936 = vmatpush.msra.mxu0 0.0
        %1937 = vmatpush.msra.mxu0 0.0
        %1938 = vmatpush.msra.mxu0 0.0
        %1939 = vmatpush.msra.mxu0 0.0
        %1940 = vmatpush.msra.mxu0 0.0
        %1941 = vmatpush.msra.mxu0 0.0
        %1942 = vmatpush.msra.mxu0 0.0
        %1943 = vmatpush.msra.mxu0 0.0
        %1944 = vmatpush.msra.mxu0 0.0
        %1945 = vmatpush.msra.mxu0 %v1858
        %1946 = vmatpush.msra.mxu0 %v1857
        %1947 = vmatmul.f32.gmra.mxu0 %v1878
        %v1948 = vpop.f32.mrf.mxu0
        %v1949 = vadd.f32 0.0, %v1948
        %1950 = vmatmul.f32.gmra.mxu0 %v1881
        %v1951 = vpop.f32.mrf.mxu0
        %v1952 = vadd.f32 0.0, %v1951
        %1953 = vmatmul.f32.gmra.mxu0 %v1884
        %v1954 = vpop.f32.mrf.mxu0
        %v1955 = vadd.f32 0.0, %v1954
        %1956 = vmatmul.f32.gmra.mxu0 %v1887
        %v1957 = vpop.f32.mrf.mxu0
        %v1958 = vadd.f32 0.0, %v1957
        %1959 = vmatmul.f32.gmra.mxu0 %v1890
        %v1960 = vpop.f32.mrf.mxu0
        %v1961 = vadd.f32 0.0, %v1960
        %1962 = vmatmul.f32.gmra.mxu0 %v1893
        %v1963 = vpop.f32.mrf.mxu0
        %v1964 = vadd.f32 0.0, %v1963
        %1965 = vmatmul.f32.gmra.mxu0 %v1896
        %v1966 = vpop.f32.mrf.mxu0
        %v1967 = vadd.f32 0.0, %v1966
        %1968 = vmatmul.f32.gmra.mxu0 %v1899
        %v1969 = vpop.f32.mrf.mxu0
        %v1970 = vadd.f32 0.0, %v1969
        %1971 = vmatmul.f32.gmra.mxu0 %v1902
        %v1972 = vpop.f32.mrf.mxu0
        %v1973 = vadd.f32 0.0, %v1972
        %1974 = vmatmul.f32.gmra.mxu0 %v1905
        %v1975 = vpop.f32.mrf.mxu0
        %v1976 = vadd.f32 0.0, %v1975
        %1977 = vmatmul.f32.gmra.mxu0 %v1908
        %v1978 = vpop.f32.mrf.mxu0
        %v1979 = vadd.f32 0.0, %v1978
        %1980 = vmatmul.f32.gmra.mxu0 %v1911
        %v1981 = vpop.f32.mrf.mxu0
        %v1982 = vadd.f32 0.0, %v1981
        %1983 = vmatmul.f32.gmra.mxu0 %v1914
        %v1984 = vpop.f32.mrf.mxu0
        %v1985 = vadd.f32 0.0, %v1984
        %1986 = vmatmul.f32.gmra.mxu0 %v1917
        %v1987 = vpop.f32.mrf.mxu0
        %v1988 = vadd.f32 0.0, %v1987
        %1989 = vmatmul.f32.gmra.mxu0 %v1920
        %v1990 = vpop.f32.mrf.mxu0
        %v1991 = vadd.f32 0.0, %v1990
        %1992 = vmatmul.f32.gmra.mxu0 %v1923
        %v1993 = vpop.f32.mrf.mxu0
        %v1994 = vadd.f32 0.0, %v1993
        %1995 = vmatmul.f32.gmra.mxu0 %v1926
        %v1996 = vpop.f32.mrf.mxu0
        %v1997 = vadd.f32 0.0, %v1996
        %1998 = vmatmul.f32.gmra.mxu0 %v1929
        %v1999 = vpop.f32.mrf.mxu0
        %v2000 = vadd.f32 0.0, %v1999
        %2001 = vdwg.mxu0
        %2002 = vst.msk [vmem:[#allocation4] sm:$0xff] %vm505, %v1949
        %2003 = vst.msk [vmem:[#allocation4 + $0x28] sm:$0xff] %vm505, %v1952
        %2006 = vrot.lane.b32.xlu0 %v1955, 64
        %v2007 = vpop.permute.xlu0 %2006
        %2008 = vrot.lane.b32.xlu0 %v1958, 64
        %v2009 = vpop.permute.xlu0 %2008
        %2012 = vst.msk [vmem:[#allocation4] sm:$0xff] %vm1170, %v2007
        %2013 = vst.msk [vmem:[#allocation4 + $0x28] sm:$0xff] %vm1170, %v2009
        %2014 = vst.msk [vmem:[#allocation4 + $0x8] sm:$0xff] %vm505, %v1961
        %2015 = vst.msk [vmem:[#allocation4 + $0x30] sm:$0xff] %vm505, %v1964
        %2018 = vrot.lane.b32.xlu0 %v1967, 64
        %v2019 = vpop.permute.xlu0 %2018
        %2020 = vrot.lane.b32.xlu0 %v1970, 64
        %v2021 = vpop.permute.xlu0 %2020
        %2024 = vst.msk [vmem:[#allocation4 + $0x8] sm:$0xff] %vm1170, %v2019
        %2025 = vst.msk [vmem:[#allocation4 + $0x30] sm:$0xff] %vm1170, %v2021
        %2026 = vst.msk [vmem:[#allocation4 + $0x10] sm:$0xff] %vm505, %v1973
        %2027 = vst.msk [vmem:[#allocation4 + $0x38] sm:$0xff] %vm505, %v1976
        %2030 = vrot.lane.b32.xlu0 %v1979, 64
        %v2031 = vpop.permute.xlu0 %2030
        %2032 = vrot.lane.b32.xlu0 %v1982, 64
        %v2033 = vpop.permute.xlu0 %2032
        %2036 = vst.msk [vmem:[#allocation4 + $0x10] sm:$0xff] %vm1170, %v2031
        %2037 = vst.msk [vmem:[#allocation4 + $0x38] sm:$0xff] %vm1170, %v2033
        %2038 = vst.msk [vmem:[#allocation4 + $0x18] sm:$0xff] %vm505, %v1985
        %2039 = vst.msk [vmem:[#allocation4 + $0x40] sm:$0xff] %vm505, %v1988
        %2042 = vrot.lane.b32.xlu0 %v1991, 64
        %v2043 = vpop.permute.xlu0 %2042
        %2044 = vrot.lane.b32.xlu0 %v1994, 64
        %v2045 = vpop.permute.xlu0 %2044
        %2048 = vst.msk [vmem:[#allocation4 + $0x18] sm:$0xff] %vm1170, %v2043
        %2049 = vst.msk [vmem:[#allocation4 + $0x40] sm:$0xff] %vm1170, %v2045
        %2050 = vst.msk [vmem:[#allocation4 + $0x20] sm:$0xff] %vm505, %v1997
        %2051 = vst.msk [vmem:[#allocation4 + $0x48] sm:$0xff] %vm505, %v2000
        %v2052 = vld [vmem:[#allocation4] sm:$0xff]
        %v2053 = vld [vmem:[#allocation4 + $0x8] sm:$0xff]
        %v2054 = vld [vmem:[#allocation4 + $0x10] sm:$0xff]
        %v2055 = vld [vmem:[#allocation4 + $0x18] sm:$0xff]
        %v2056 = vld [vmem:[#allocation4 + $0x20] sm:$0xff]
        %v2057 = vld [vmem:[#allocation4 + $0x28] sm:$0xff]
        %v2058 = vld [vmem:[#allocation4 + $0x30] sm:$0xff]
        %v2059 = vld [vmem:[#allocation4 + $0x38] sm:$0xff]
        %v2060 = vld [vmem:[#allocation4 + $0x40] sm:$0xff]
        %v2061 = vld [vmem:[#allocation4 + $0x48] sm:$0xff]
        %v2062 = vld [vmem:[%s9] sm:$0xff]
        %v2063 = vld [vmem:[%s9 + $0x8] sm:$0xff]
        %v2064 = vld [vmem:[%s9 + $0x10] sm:$0xff]
        %v2065 = vld [vmem:[%s9 + $0x18] sm:$0xff]
        %v2066 = vld [vmem:[%s9 + $0x20] sm:$0xff]
        %v2067 = vld [vmem:[%s9 + $0x28] sm:$0xff]
        %v2068 = vld [vmem:[%s9 + $0x30] sm:$0xff]
        %v2069 = vld [vmem:[%s9 + $0x38] sm:$0xff]
        %v2070 = vld [vmem:[%s9 + $0x40] sm:$0xff]
        %v2071 = vld [vmem:[%s9 + $0x48] sm:$0xff]
        %v2072 = vld [vmem:[%s9 + $0x50] sm:$0xff]
        %v2073 = vld [vmem:[%s9 + $0x58] sm:$0xff]
        %v2074 = vld [vmem:[%s9 + $0x60] sm:$0xff]
        %v2075 = vld [vmem:[%s9 + $0x68] sm:$0xff]
        %v2076 = vld [vmem:[%s9 + $0x70] sm:$0xff]
        %v2077 = vld [vmem:[%s9 + $0x78] sm:$0xff]
        %v2078 = vld [vmem:[%s9 + $0x80] sm:$0xff]
        %v2079 = vld [vmem:[%s9 + $0x88] sm:$0xff]
        %v2080 = vld [vmem:[%s9 + $0x90] sm:$0xff]
        %v2081 = vld [vmem:[%s9 + $0x98] sm:$0xff]
        %v2082 = vld [vmem:[%s9 + $0xa0] sm:$0xff]
        %v2083 = vld [vmem:[%s9 + $0xa8] sm:$0xff]
        %v2084 = vld [vmem:[%s9 + $0xb0] sm:$0xff]
        %v2085 = vld [vmem:[%s9 + $0xb8] sm:$0xff]
        %v2086 = vld [vmem:[%s9 + $0xc0] sm:$0xff]
        %v2087 = vld [vmem:[%s9 + $0xc8] sm:$0xff]
        %v2088 = vld [vmem:[%s9 + $0xd0] sm:$0xff]
        %v2089 = vld [vmem:[%s9 + $0xd8] sm:$0xff]
        %v2090 = vld [vmem:[%s9 + $0xe0] sm:$0xff]
        %v2091 = vld [vmem:[%s9 + $0xe8] sm:$0xff]
        %v2092 = vld [vmem:[%s9 + $0xf0] sm:$0xff]
        %v2093 = vld [vmem:[%s9 + $0xf8] sm:$0xff]
        %v2094 = vld [vmem:[%s9 + $0x100] sm:$0xff]
        %v2095 = vld [vmem:[%s9 + $0x108] sm:$0xff]
        %v2096 = vld [vmem:[%s9 + $0x110] sm:$0xff]
        %v2097 = vld [vmem:[%s9 + $0x118] sm:$0xff]
        %v2098 = vld [vmem:[%s9 + $0x120] sm:$0xff]
        %v2099 = vld [vmem:[%s9 + $0x128] sm:$0xff]
        %v2100 = vld [vmem:[%s9 + $0x130] sm:$0xff]
        %v2101 = vld [vmem:[%s9 + $0x138] sm:$0xff]
        %v2102 = vld [vmem:[%s9 + $0x140] sm:$0xff]
        %v2103 = vld [vmem:[%s9 + $0x148] sm:$0xff]
        %v2104 = vld [vmem:[%s9 + $0x150] sm:$0xff]
        %v2105 = vld [vmem:[%s9 + $0x158] sm:$0xff]
        %v2106 = vld [vmem:[%s9 + $0x160] sm:$0xff]
        %v2107 = vld [vmem:[%s9 + $0x168] sm:$0xff]
        %v2108 = vld [vmem:[%s9 + $0x170] sm:$0xff]
        %v2109 = vld [vmem:[%s9 + $0x178] sm:$0xff]
        %v2110 = vld [vmem:[%s9 + $0x180] sm:$0xff]
        %v2111 = vld [vmem:[%s9 + $0x188] sm:$0xff]
        %v2112 = vld [vmem:[%s9 + $0x190] sm:$0xff]
        %v2113 = vld [vmem:[%s9 + $0x198] sm:$0xff]
        %v2114 = vld [vmem:[%s9 + $0x1a0] sm:$0xff]
        %v2115 = vld [vmem:[%s9 + $0x1a8] sm:$0xff]
        %v2116 = vld [vmem:[%s9 + $0x1b0] sm:$0xff]
        %v2117 = vld [vmem:[%s9 + $0x1b8] sm:$0xff]
        %v2118 = vld [vmem:[%s9 + $0x1c0] sm:$0xff]
        %v2119 = vld [vmem:[%s9 + $0x1c8] sm:$0xff]
        %v2120 = vld [vmem:[%s9 + $0x1d0] sm:$0xff]
        %v2121 = vld [vmem:[%s9 + $0x1d8] sm:$0xff]
        %v2122 = vld [vmem:[%s9 + $0x1e0] sm:$0xff]
        %v2123 = vld [vmem:[%s9 + $0x1e8] sm:$0xff]
        %v2124 = vld [vmem:[%s9 + $0x1f0] sm:$0xff]
        %v2125 = vld [vmem:[%s9 + $0x1f8] sm:$0xff]
        %v2126 = vld [vmem:[%s9 + $0x200] sm:$0xff]
        %v2127 = vld [vmem:[%s9 + $0x208] sm:$0xff]
        %v2128 = vld [vmem:[%s9 + $0x210] sm:$0xff]
        %v2129 = vld [vmem:[%s9 + $0x218] sm:$0xff]
        %v2130 = vld [vmem:[%s9 + $0x220] sm:$0xff]
        %v2131 = vld [vmem:[%s9 + $0x228] sm:$0xff]
        %v2132 = vld [vmem:[%s9 + $0x230] sm:$0xff]
        %v2133 = vld [vmem:[%s9 + $0x238] sm:$0xff]
        %v2135 = vsel %vm505, %v2056, 0
        %v2138 = vsel %vm505, %v2061, 0
        %2140 = vmatpush.msra.mxu0 %v2077
        %2141 = vmatpush.msra.mxu0 %v2076
        %2142 = vmatpush.msra.mxu0 %v2075
        %2143 = vmatpush.msra.mxu0 %v2074
        %2144 = vmatpush.msra.mxu0 %v2073
        %2145 = vmatpush.msra.mxu0 %v2072
        %2146 = vmatpush.msra.mxu0 %v2071
        %2147 = vmatpush.msra.mxu0 %v2070
        %2148 = vmatpush.msra.mxu0 %v2069
        %2149 = vmatpush.msra.mxu0 %v2068
        %2150 = vmatpush.msra.mxu0 %v2067
        %2151 = vmatpush.msra.mxu0 %v2066
        %2152 = vmatpush.msra.mxu0 %v2065
        %2153 = vmatpush.msra.mxu0 %v2064
        %2154 = vmatpush.msra.mxu0 %v2063
        %2155 = vmatpush.msra.mxu0 %v2062
        %2156 = vmatmul.f32.gmra.mxu0 %v2052
        %v2157 = vpop.f32.mrf.mxu0
        %v2158 = vadd.f32 0.0, %v2157
        %2159 = vmatmul.f32.gmra.mxu0 %v2057
        %v2160 = vpop.f32.mrf.mxu0
        %v2161 = vadd.f32 0.0, %v2160
        %2162 = vdwg.mxu0
        %2163 = vmatpush.msra.mxu0 %v2093
        %2164 = vmatpush.msra.mxu0 %v2092
        %2165 = vmatpush.msra.mxu0 %v2091
        %2166 = vmatpush.msra.mxu0 %v2090
        %2167 = vmatpush.msra.mxu0 %v2089
        %2168 = vmatpush.msra.mxu0 %v2088
        %2169 = vmatpush.msra.mxu0 %v2087
        %2170 = vmatpush.msra.mxu0 %v2086
        %2171 = vmatpush.msra.mxu0 %v2085
        %2172 = vmatpush.msra.mxu0 %v2084
        %2173 = vmatpush.msra.mxu0 %v2083
        %2174 = vmatpush.msra.mxu0 %v2082
        %2175 = vmatpush.msra.mxu0 %v2081
        %2176 = vmatpush.msra.mxu0 %v2080
        %2177 = vmatpush.msra.mxu0 %v2079
        %2178 = vmatpush.msra.mxu0 %v2078
        %2179 = vmatmul.f32.gmra.mxu0 %v2053
        %v2180 = vpop.f32.mrf.mxu0
        %v2181 = vadd.f32 %v2158, %v2180
        %2182 = vmatmul.f32.gmra.mxu0 %v2058
        %v2183 = vpop.f32.mrf.mxu0
        %v2184 = vadd.f32 %v2161, %v2183
        %2185 = vdwg.mxu0
        %2186 = vmatpush.msra.mxu0 %v2109
        %2187 = vmatpush.msra.mxu0 %v2108
        %2188 = vmatpush.msra.mxu0 %v2107
        %2189 = vmatpush.msra.mxu0 %v2106
        %2190 = vmatpush.msra.mxu0 %v2105
        %2191 = vmatpush.msra.mxu0 %v2104
        %2192 = vmatpush.msra.mxu0 %v2103
        %2193 = vmatpush.msra.mxu0 %v2102
        %2194 = vmatpush.msra.mxu0 %v2101
        %2195 = vmatpush.msra.mxu0 %v2100
        %2196 = vmatpush.msra.mxu0 %v2099
        %2197 = vmatpush.msra.mxu0 %v2098
        %2198 = vmatpush.msra.mxu0 %v2097
        %2199 = vmatpush.msra.mxu0 %v2096
        %2200 = vmatpush.msra.mxu0 %v2095
        %2201 = vmatpush.msra.mxu0 %v2094
        %2202 = vmatmul.f32.gmra.mxu0 %v2054
        %v2203 = vpop.f32.mrf.mxu0
        %v2204 = vadd.f32 %v2181, %v2203
        %2205 = vmatmul.f32.gmra.mxu0 %v2059
        %v2206 = vpop.f32.mrf.mxu0
        %v2207 = vadd.f32 %v2184, %v2206
        %2208 = vdwg.mxu0
        %2209 = vmatpush.msra.mxu0 %v2125
        %2210 = vmatpush.msra.mxu0 %v2124
        %2211 = vmatpush.msra.mxu0 %v2123
        %2212 = vmatpush.msra.mxu0 %v2122
        %2213 = vmatpush.msra.mxu0 %v2121
        %2214 = vmatpush.msra.mxu0 %v2120
        %2215 = vmatpush.msra.mxu0 %v2119
        %2216 = vmatpush.msra.mxu0 %v2118
        %2217 = vmatpush.msra.mxu0 %v2117
        %2218 = vmatpush.msra.mxu0 %v2116
        %2219 = vmatpush.msra.mxu0 %v2115
        %2220 = vmatpush.msra.mxu0 %v2114
        %2221 = vmatpush.msra.mxu0 %v2113
        %2222 = vmatpush.msra.mxu0 %v2112
        %2223 = vmatpush.msra.mxu0 %v2111
        %2224 = vmatpush.msra.mxu0 %v2110
        %2225 = vmatmul.f32.gmra.mxu0 %v2055
        %v2226 = vpop.f32.mrf.mxu0
        %v2227 = vadd.f32 %v2204, %v2226
        %2228 = vmatmul.f32.gmra.mxu0 %v2060
        %v2229 = vpop.f32.mrf.mxu0
        %v2230 = vadd.f32 %v2207, %v2229
        %2231 = vdwg.mxu0
        %2232 = vmatpush.msra.mxu0 0.0
        %2233 = vmatpush.msra.mxu0 0.0
        %2234 = vmatpush.msra.mxu0 0.0
        %2235 = vmatpush.msra.mxu0 0.0
        %2236 = vmatpush.msra.mxu0 0.0
        %2237 = vmatpush.msra.mxu0 0.0
        %2238 = vmatpush.msra.mxu0 0.0
        %2239 = vmatpush.msra.mxu0 0.0
        %2240 = vmatpush.msra.mxu0 %v2133
        %2241 = vmatpush.msra.mxu0 %v2132
        %2242 = vmatpush.msra.mxu0 %v2131
        %2243 = vmatpush.msra.mxu0 %v2130
        %2244 = vmatpush.msra.mxu0 %v2129
        %2245 = vmatpush.msra.mxu0 %v2128
        %2246 = vmatpush.msra.mxu0 %v2127
        %2247 = vmatpush.msra.mxu0 %v2126
        %2248 = vmatmul.f32.gmra.mxu0 %v2135
        %v2249 = vpop.f32.mrf.mxu0
        %v2250 = vadd.f32 %v2227, %v2249
        %2251 = vmatmul.f32.gmra.mxu0 %v2138
        %v2252 = vpop.f32.mrf.mxu0
        %v2253 = vadd.f32 %v2230, %v2252
        %2254 = vdwg.mxu0
        %v2255 = vmax.f32 %v2250, 0.0
        %v2256 = vmax.f32 %v2253, 0.0
        %v2257 = vld [vmem:[%s10] sm:$0xff]
        %v2258 = vld [vmem:[%s10 + $0x8] sm:$0xff]
        %v2259 = vld [vmem:[%s10 + $0x10] sm:$0xff]
        %v2260 = vld [vmem:[%s10 + $0x18] sm:$0xff]
        %v2261 = vld [vmem:[%s10 + $0x20] sm:$0xff]
        %v2262 = vld [vmem:[%s10 + $0x28] sm:$0xff]
        %v2263 = vld [vmem:[%s10 + $0x30] sm:$0xff]
        %v2264 = vld [vmem:[%s10 + $0x38] sm:$0xff]
        %v2266 = vsel %vm505, %v2255, 0
        %v2269 = vsel %vm505, %v2256, 0
        %2271 = vmatpush.msra.mxu0 0.0
        %2272 = vmatpush.msra.mxu0 0.0
        %2273 = vmatpush.msra.mxu0 0.0
        %2274 = vmatpush.msra.mxu0 0.0
        %2275 = vmatpush.msra.mxu0 0.0
        %2276 = vmatpush.msra.mxu0 0.0
        %2277 = vmatpush.msra.mxu0 0.0
        %2278 = vmatpush.msra.mxu0 0.0
        %2279 = vmatpush.msra.mxu0 %v2264
        %2280 = vmatpush.msra.mxu0 %v2263
        %2281 = vmatpush.msra.mxu0 %v2262
        %2282 = vmatpush.msra.mxu0 %v2261
        %2283 = vmatpush.msra.mxu0 %v2260
        %2284 = vmatpush.msra.mxu0 %v2259
        %2285 = vmatpush.msra.mxu0 %v2258
        %2286 = vmatpush.msra.mxu0 %v2257
        %2287 = vmatmul.f32.gmra.mxu0 %v2266
        %v2288 = vpop.f32.mrf.mxu0
        %v2289 = vadd.f32 0.0, %v2288
        %2290 = vmatmul.f32.gmra.mxu0 %v2269
        %v2291 = vpop.f32.mrf.mxu0
        %v2292 = vadd.f32 0.0, %v2291
        %2293 = vdwg.mxu0
        %v2294 = vadd.f32 %v1855, %v2289
        %v2295 = vadd.f32 %v1856, %v2292
        %v2296 = vmax.f32 %v2294, 0.0
        %v2297 = vmax.f32 %v2295, 0.0
        %2298 = vst.msk [vmem:[%s379] sm:$0xff] %vm505, %v2296
        %2299 = vst.msk [vmem:[%s379 + $0x8] sm:$0xff] %vm505, %v2297
        %s2300 = sand.u32 %s269, 1
        %s2301 = scalar_lea.sflag [#allocation6], %s2300
        %s2302 = sand.u32 %s269, 1
        %s2303 = smul.addr %s2302, 16
        %s2304 = scalar_lea.vmem [#allocation5], %s2303
        // Predicated region
        $region65: #{encoder_forward.1} parent=63 // pred_check
          %p2305 = pneg %p279
        $region66: #{encoder_forward.1} parent=63 // pred_check_branch
          %2307 = sbr.rel (%p2305) target = $region68
        $region67: #{encoder_forward.1} parent=63 // pred_region
          %2309 = vsyncadd %s2301, 0
          %s2310 = smul.addr %s25, 2
          %s2311 = smul.addr %s2310, 8
          %s2312 = scalar_lea.hbm %s11, %s2311
          %s2313 = sshll.u32 %s2304, 4
          %s2314 = int_to_ptr.vmem [resolvable:$true] %s2313
          %s2315 = sshll.u32 %s2312, 4
          %s2316 = int_to_ptr.hbm [resolvable:$true] %s2315
          %2321 = dma.vmem_to_hbm [thread:$0]  %s2314, 256, %s2316, %s2301, 128, 128, 8
        $region68: #{encoder_forward.1} parent=63 // pred_fallthru
          _
      $region64: #{encoder_forward.1} parent=5 // pred_fallthru
        _
      %p2322 = scmp.le.s32.totalorder 2, %s20
      // Predicated region
      $region69: #{encoder_forward.1} parent=5 // pred_check
        %p2323 = pneg %p2322
      $region70: #{encoder_forward.1} parent=5 // pred_check_branch
        %2325 = sbr.rel (%p2323) target = $region72
      $region71: #{encoder_forward.1} parent=5 // pred_region
        %s2326 = ssub.s32 %s20, 2
        // Predicated region
        $region73: #{encoder_forward.1} parent=71 // pred_check
          %p2327 = pneg %p285
        $region74: #{encoder_forward.1} parent=71 // pred_check_branch
          %2329 = sbr.rel (%p2327) target = $region76
        $region75: #{encoder_forward.1} parent=71 // pred_region
          %s2330 = sand.u32 %s270, 1
          %s2331 = scalar_lea.sflag [#allocation6], %s2330
          %s2332 = sand.u32 %s270, 1
          %s2333 = smul.addr %s2332, 16
          %s2334 = scalar_lea.vmem [#allocation5], %s2333
          %2336 = dma.done %s2331, 256
        $region76: #{encoder_forward.1} parent=71 // pred_fallthru
          _
      $region72: #{encoder_forward.1} parent=5 // pred_fallthru
        _
    $region6: #{encoder_forward.1} parent=1 // loop_footer
      %s24 = sadd.s32 1, %s20
    $region7: #{encoder_forward.1} parent=1 // loop_footer_branch
      %19 = sbr.rel target = $region3
    $region8: #{encoder_forward.1} parent=1 // loop_exit
      _
    %2337 = vsyncpa [#allocation6], 1
    %s2338 = scalar_lea.sflag [#allocation6], 1
    %2339 = vsyncpa %s2338, 1

</llo_original>
